<compile_context>
chip_gen: v7x
topology: tpu7x:2x2x1
jax: 0.10.0
libtpu: 0.0.40
codegen_flags: <defaults>
</compile_context>

<pallas_src>
import jax
import jax.numpy as jnp
from jax.experimental import pallas as pl
from jax.experimental.pallas import tpu as pltpu

C1 = 0.01 ** 2
C2 = 0.03 ** 2


def _l1ssim_kernel(xp_ref, yp_ref, l1_ref, ssim_ref):
    # xp_ref / yp_ref: (TB, H+2, W+2) reflect-padded images (TB images/step).
    xp = xp_ref[...].astype(jnp.float32)
    yp = yp_ref[...].astype(jnp.float32)
    _, Hp, Wp = xp.shape
    H, W = Hp - 2, Wp - 2

    def pool3(a):
        # Separable 3x3 box filter on the padded block:
        #   3-tap sum along W (lane axis), then 3-tap sum along H (sublanes).
        r = a[:, :, 0:W] + a[:, :, 1:W + 1] + a[:, :, 2:W + 2]      # (TB, H+2, W)
        c = r[:, 0:H, :] + r[:, 1:H + 1, :] + r[:, 2:H + 2, :]      # (TB, H, W)
        return c * jnp.float32(1.0 / 9.0)

    # Unpadded interior views.
    x = xp[:, 1:H + 1, 1:W + 1]
    y = yp[:, 1:H + 1, 1:W + 1]

    mu_x = pool3(xp)
    mu_y = pool3(yp)
    sigma_x = pool3(xp * xp) - mu_x * mu_x
    sigma_y = pool3(yp * yp) - mu_y * mu_y
    sigma_xy = pool3(xp * yp) - mu_x * mu_y

    ssim_n = (2.0 * mu_x * mu_y + C1) * (2.0 * sigma_xy + C2)
    ssim_d = (mu_x * mu_x + mu_y * mu_y + C1) * (sigma_x + sigma_y + C2)
    ssim = jnp.clip((1.0 - ssim_n / ssim_d) * 0.5, 0.0, 1.0)

    l1 = jnp.abs(x - y)

    # Per-block partial sums: reduce only over the leading (image) axis —
    # pure VPU adds, no cross-lane/sublane (XLU) reduction inside the kernel.
    l1_ref[...] = jnp.sum(l1, axis=0, keepdims=True)       # (1, H, W)
    ssim_ref[...] = jnp.sum(ssim, axis=0, keepdims=True)   # (1, H, W)


def _pick_block_images(B, Hp, Wp, itemsize,
                       budget_bytes=24 * 1024 * 1024, live_factor=20):
    """Largest divisor of B whose block (inputs + live intermediates) fits a
    conservative VMEM budget (sized for v7x's 64 MiB physical VMEM)."""
    per_img = Hp * Wp * max(int(itemsize), 4) * live_factor
    cap = max(1, budget_bytes // per_img)
    tb = 1
    for d in range(1, B + 1):
        if B % d == 0 and d <= cap:
            tb = d
    return tb


def l1_ssim_loss(output, target, ssim_factor=0.85):
    """Returns (combined_loss, mean_l1, mean_ssim) as float32 scalars."""
    N, C, H, W = output.shape
    B = N * C

    # ReflectionPad2d(1) — wrapper glue (see TODO above about moving in-kernel).
    pad = ((0, 0), (0, 0), (1, 1), (1, 1))
    xp = jnp.pad(output, pad, mode="reflect").reshape(B, H + 2, W + 2)
    yp = jnp.pad(target, pad, mode="reflect").reshape(B, H + 2, W + 2)

    TB = _pick_block_images(B, H + 2, W + 2, xp.dtype.itemsize)
    G = B // TB

    l1_part, ssim_part = pl.pallas_call(
        _l1ssim_kernel,
        out_shape=(
            jax.ShapeDtypeStruct((G, H, W), jnp.float32),
            jax.ShapeDtypeStruct((G, H, W), jnp.float32),
        ),
        grid=(G,),
        in_specs=[
            pl.BlockSpec((TB, H + 2, W + 2), lambda g: (g, 0, 0)),
            pl.BlockSpec((TB, H + 2, W + 2), lambda g: (g, 0, 0)),
        ],
        out_specs=(
            pl.BlockSpec((1, H, W), lambda g: (g, 0, 0)),
            pl.BlockSpec((1, H, W), lambda g: (g, 0, 0)),
        ),
        compiler_params=pltpu.CompilerParams(
            dimension_semantics=("parallel",),
            vmem_limit_bytes=48 * 1024 * 1024,
        ),
    )(xp, yp)

    # Final tiny reduction of the per-block partial-sum maps (wrapper glue).
    n_elem = jnp.float32(B * H * W)
    l1_mean = jnp.sum(l1_part) / n_elem
    ssim_mean = jnp.sum(ssim_part) / n_elem
    f = jnp.float32(ssim_factor)
    # mean(l1*(1-f) + ssim*f) == mean(l1)*(1-f) + mean(ssim)*f
    loss = l1_mean * (1.0 - f) + ssim_mean * f
    return loss, l1_mean, ssim_mean


def _l1_ssim_loss_ref(output, target, ssim_factor=0.85):
    """Pure-JAX reference mirroring the PyTorch module (for validation)."""
    output = output.astype(jnp.float32)
    target = target.astype(jnp.float32)
    pad = ((0, 0), (0, 0), (1, 1), (1, 1))
    xp = jnp.pad(output, pad, mode="reflect")
    yp = jnp.pad(target, pad, mode="reflect")
    H, W = output.shape[2], output.shape[3]

    def pool3(a):
        s = jnp.zeros(output.shape, jnp.float32)
        for dy in range(3):
            for dx in range(3):
                s = s + a[:, :, dy:dy + H, dx:dx + W]
        return s / 9.0

    mu_x = pool3(xp)
    mu_y = pool3(yp)
    sigma_x = pool3(xp * xp) - mu_x ** 2
    sigma_y = pool3(yp * yp) - mu_y ** 2
    sigma_xy = pool3(xp * yp) - mu_x * mu_y
    ssim_n = (2 * mu_x * mu_y + C1) * (2 * sigma_xy + C2)
    ssim_d = (mu_x ** 2 + mu_y ** 2 + C1) * (sigma_x + sigma_y + C2)
    ssim = jnp.clip((1.0 - ssim_n / ssim_d) / 2.0, 0.0, 1.0)
    l1 = jnp.abs(output - target)
    f = ssim_factor
    return (jnp.mean(l1 * (1 - f) + ssim * f), jnp.mean(l1), jnp.mean(ssim))


if __name__ == "__main__":
    key = jax.random.PRNGKey(0)
    k1, k2 = jax.random.split(key)
    # Small shapes consistent with the module's NCHW image inputs.
    output = jax.random.uniform(k1, (2, 4, 16, 16), dtype=jnp.float32)
    target = jax.random.uniform(k2, (2, 4, 16, 16), dtype=jnp.float32)

    loss, l1_mean, ssim_mean = jax.block_until_ready(
        l1_ssim_loss(output, target, ssim_factor=0.85))

    ref_loss, ref_l1, ref_ssim = _l1_ssim_loss_ref(
        output, target, ssim_factor=0.85)

    assert jnp.allclose(loss, ref_loss, atol=1e-5, rtol=1e-5), (loss, ref_loss)
    assert jnp.allclose(l1_mean, ref_l1, atol=1e-5, rtol=1e-5), (l1_mean, ref_l1)
    assert jnp.allclose(ssim_mean, ref_ssim, atol=1e-5, rtol=1e-5), (
        ssim_mean, ref_ssim)

    print("KERNEL_OK")
</pallas_src>

<mosaic_0001>
module attributes {stable_mosaic.version = 11 : i64} {
  func.func @_l1ssim_kernel(%arg0: i32, %arg1: memref<8x18x18xf32, #tpu.memory_space<vmem>>, %arg2: memref<8x18x18xf32, #tpu.memory_space<vmem>>, %arg3: memref<1x16x16xf32, #tpu.memory_space<vmem>>, %arg4: memref<1x16x16xf32, #tpu.memory_space<vmem>>) attributes {dimension_semantics = [#tpu.dimension_semantics<parallel>], iteration_bounds = array<i64: 1>, scalar_prefetch = 0 : i64, scratch_operands = 0 : i64, tpu.core_type = #tpu.core_type<tc>, window_params = [{transform_indices = @transform_0, window_bounds = array<i64: 8, 18, 18>}, {transform_indices = @transform_1, window_bounds = array<i64: 8, 18, 18>}, {transform_indices = @transform_2, window_bounds = array<i64: 1, 16, 16>}, {transform_indices = @transform_3, window_bounds = array<i64: 1, 16, 16>}]} {
    %c0 = arith.constant 0 : index
    %c0_0 = arith.constant 0 : index
    %c0_1 = arith.constant 0 : index
    %0 = vector.load %arg1[%c0, %c0_0, %c0_1] : memref<8x18x18xf32, #tpu.memory_space<vmem>>, vector<8x18x18xf32>
    %c0_2 = arith.constant 0 : index
    %c0_3 = arith.constant 0 : index
    %c0_4 = arith.constant 0 : index
    %1 = vector.load %arg2[%c0_2, %c0_3, %c0_4] : memref<8x18x18xf32, #tpu.memory_space<vmem>>, vector<8x18x18xf32>
    %2 = vector.extract_strided_slice %0 {offsets = [0, 1, 1], sizes = [8, 16, 16], strides = [1, 1, 1]} : vector<8x18x18xf32> to vector<8x16x16xf32>
    %3 = vector.extract_strided_slice %1 {offsets = [0, 1, 1], sizes = [8, 16, 16], strides = [1, 1, 1]} : vector<8x18x18xf32> to vector<8x16x16xf32>
    %4 = vector.extract_strided_slice %0 {offsets = [0, 0, 0], sizes = [8, 18, 16], strides = [1, 1, 1]} : vector<8x18x18xf32> to vector<8x18x16xf32>
    %5 = vector.extract_strided_slice %0 {offsets = [0, 0, 1], sizes = [8, 18, 16], strides = [1, 1, 1]} : vector<8x18x18xf32> to vector<8x18x16xf32>
    %6 = arith.addf %4, %5 : vector<8x18x16xf32>
    %7 = vector.extract_strided_slice %0 {offsets = [0, 0, 2], sizes = [8, 18, 16], strides = [1, 1, 1]} : vector<8x18x18xf32> to vector<8x18x16xf32>
    %8 = arith.addf %6, %7 : vector<8x18x16xf32>
    %9 = vector.extract_strided_slice %8 {offsets = [0, 0, 0], sizes = [8, 16, 16], strides = [1, 1, 1]} : vector<8x18x16xf32> to vector<8x16x16xf32>
    %10 = vector.extract_strided_slice %8 {offsets = [0, 1, 0], sizes = [8, 16, 16], strides = [1, 1, 1]} : vector<8x18x16xf32> to vector<8x16x16xf32>
    %11 = arith.addf %9, %10 : vector<8x16x16xf32>
    %12 = vector.extract_strided_slice %8 {offsets = [0, 2, 0], sizes = [8, 16, 16], strides = [1, 1, 1]} : vector<8x18x16xf32> to vector<8x16x16xf32>
    %13 = arith.addf %11, %12 : vector<8x16x16xf32>
    %cst = arith.constant 0.111111112 : f32
    %14 = vector.broadcast %cst : f32 to vector<8x16x16xf32>
    %15 = arith.mulf %13, %14 : vector<8x16x16xf32>
    %16 = vector.extract_strided_slice %1 {offsets = [0, 0, 0], sizes = [8, 18, 16], strides = [1, 1, 1]} : vector<8x18x18xf32> to vector<8x18x16xf32>
    %17 = vector.extract_strided_slice %1 {offsets = [0, 0, 1], sizes = [8, 18, 16], strides = [1, 1, 1]} : vector<8x18x18xf32> to vector<8x18x16xf32>
    %18 = arith.addf %16, %17 : vector<8x18x16xf32>
    %19 = vector.extract_strided_slice %1 {offsets = [0, 0, 2], sizes = [8, 18, 16], strides = [1, 1, 1]} : vector<8x18x18xf32> to vector<8x18x16xf32>
    %20 = arith.addf %18, %19 : vector<8x18x16xf32>
    %21 = vector.extract_strided_slice %20 {offsets = [0, 0, 0], sizes = [8, 16, 16], strides = [1, 1, 1]} : vector<8x18x16xf32> to vector<8x16x16xf32>
    %22 = vector.extract_strided_slice %20 {offsets = [0, 1, 0], sizes = [8, 16, 16], strides = [1, 1, 1]} : vector<8x18x16xf32> to vector<8x16x16xf32>
    %23 = arith.addf %21, %22 : vector<8x16x16xf32>
    %24 = vector.extract_strided_slice %20 {offsets = [0, 2, 0], sizes = [8, 16, 16], strides = [1, 1, 1]} : vector<8x18x16xf32> to vector<8x16x16xf32>
    %25 = arith.addf %23, %24 : vector<8x16x16xf32>
    %cst_5 = arith.constant 0.111111112 : f32
    %26 = vector.broadcast %cst_5 : f32 to vector<8x16x16xf32>
    %27 = arith.mulf %25, %26 : vector<8x16x16xf32>
    %28 = arith.mulf %0, %0 : vector<8x18x18xf32>
    %29 = vector.extract_strided_slice %28 {offsets = [0, 0, 0], sizes = [8, 18, 16], strides = [1, 1, 1]} : vector<8x18x18xf32> to vector<8x18x16xf32>
    %30 = vector.extract_strided_slice %28 {offsets = [0, 0, 1], sizes = [8, 18, 16], strides = [1, 1, 1]} : vector<8x18x18xf32> to vector<8x18x16xf32>
    %31 = arith.addf %29, %30 : vector<8x18x16xf32>
    %32 = vector.extract_strided_slice %28 {offsets = [0, 0, 2], sizes = [8, 18, 16], strides = [1, 1, 1]} : vector<8x18x18xf32> to vector<8x18x16xf32>
    %33 = arith.addf %31, %32 : vector<8x18x16xf32>
    %34 = vector.extract_strided_slice %33 {offsets = [0, 0, 0], sizes = [8, 16, 16], strides = [1, 1, 1]} : vector<8x18x16xf32> to vector<8x16x16xf32>
    %35 = vector.extract_strided_slice %33 {offsets = [0, 1, 0], sizes = [8, 16, 16], strides = [1, 1, 1]} : vector<8x18x16xf32> to vector<8x16x16xf32>
    %36 = arith.addf %34, %35 : vector<8x16x16xf32>
    %37 = vector.extract_strided_slice %33 {offsets = [0, 2, 0], sizes = [8, 16, 16], strides = [1, 1, 1]} : vector<8x18x16xf32> to vector<8x16x16xf32>
    %38 = arith.addf %36, %37 : vector<8x16x16xf32>
    %cst_6 = arith.constant 0.111111112 : f32
    %39 = vector.broadcast %cst_6 : f32 to vector<8x16x16xf32>
    %40 = arith.mulf %38, %39 : vector<8x16x16xf32>
    %41 = arith.mulf %15, %15 : vector<8x16x16xf32>
    %42 = arith.subf %40, %41 : vector<8x16x16xf32>
    %43 = arith.mulf %1, %1 : vector<8x18x18xf32>
    %44 = vector.extract_strided_slice %43 {offsets = [0, 0, 0], sizes = [8, 18, 16], strides = [1, 1, 1]} : vector<8x18x18xf32> to vector<8x18x16xf32>
    %45 = vector.extract_strided_slice %43 {offsets = [0, 0, 1], sizes = [8, 18, 16], strides = [1, 1, 1]} : vector<8x18x18xf32> to vector<8x18x16xf32>
    %46 = arith.addf %44, %45 : vector<8x18x16xf32>
    %47 = vector.extract_strided_slice %43 {offsets = [0, 0, 2], sizes = [8, 18, 16], strides = [1, 1, 1]} : vector<8x18x18xf32> to vector<8x18x16xf32>
    %48 = arith.addf %46, %47 : vector<8x18x16xf32>
    %49 = vector.extract_strided_slice %48 {offsets = [0, 0, 0], sizes = [8, 16, 16], strides = [1, 1, 1]} : vector<8x18x16xf32> to vector<8x16x16xf32>
    %50 = vector.extract_strided_slice %48 {offsets = [0, 1, 0], sizes = [8, 16, 16], strides = [1, 1, 1]} : vector<8x18x16xf32> to vector<8x16x16xf32>
    %51 = arith.addf %49, %50 : vector<8x16x16xf32>
    %52 = vector.extract_strided_slice %48 {offsets = [0, 2, 0], sizes = [8, 16, 16], strides = [1, 1, 1]} : vector<8x18x16xf32> to vector<8x16x16xf32>
    %53 = arith.addf %51, %52 : vector<8x16x16xf32>
    %cst_7 = arith.constant 0.111111112 : f32
    %54 = vector.broadcast %cst_7 : f32 to vector<8x16x16xf32>
    %55 = arith.mulf %53, %54 : vector<8x16x16xf32>
    %56 = arith.mulf %27, %27 : vector<8x16x16xf32>
    %57 = arith.subf %55, %56 : vector<8x16x16xf32>
    %58 = arith.mulf %0, %1 : vector<8x18x18xf32>
    %59 = vector.extract_strided_slice %58 {offsets = [0, 0, 0], sizes = [8, 18, 16], strides = [1, 1, 1]} : vector<8x18x18xf32> to vector<8x18x16xf32>
    %60 = vector.extract_strided_slice %58 {offsets = [0, 0, 1], sizes = [8, 18, 16], strides = [1, 1, 1]} : vector<8x18x18xf32> to vector<8x18x16xf32>
    %61 = arith.addf %59, %60 : vector<8x18x16xf32>
    %62 = vector.extract_strided_slice %58 {offsets = [0, 0, 2], sizes = [8, 18, 16], strides = [1, 1, 1]} : vector<8x18x18xf32> to vector<8x18x16xf32>
    %63 = arith.addf %61, %62 : vector<8x18x16xf32>
    %64 = vector.extract_strided_slice %63 {offsets = [0, 0, 0], sizes = [8, 16, 16], strides = [1, 1, 1]} : vector<8x18x16xf32> to vector<8x16x16xf32>
    %65 = vector.extract_strided_slice %63 {offsets = [0, 1, 0], sizes = [8, 16, 16], strides = [1, 1, 1]} : vector<8x18x16xf32> to vector<8x16x16xf32>
    %66 = arith.addf %64, %65 : vector<8x16x16xf32>
    %67 = vector.extract_strided_slice %63 {offsets = [0, 2, 0], sizes = [8, 16, 16], strides = [1, 1, 1]} : vector<8x18x16xf32> to vector<8x16x16xf32>
    %68 = arith.addf %66, %67 : vector<8x16x16xf32>
    %cst_8 = arith.constant 0.111111112 : f32
    %69 = vector.broadcast %cst_8 : f32 to vector<8x16x16xf32>
    %70 = arith.mulf %68, %69 : vector<8x16x16xf32>
    %71 = arith.mulf %15, %27 : vector<8x16x16xf32>
    %72 = arith.subf %70, %71 : vector<8x16x16xf32>
    %cst_9 = arith.constant 2.000000e+00 : f32
    %73 = vector.broadcast %cst_9 : f32 to vector<8x16x16xf32>
    %74 = arith.mulf %73, %15 : vector<8x16x16xf32>
    %75 = arith.mulf %74, %27 : vector<8x16x16xf32>
    %cst_10 = arith.constant 9.99999974E-5 : f32
    %76 = vector.broadcast %cst_10 : f32 to vector<8x16x16xf32>
    %77 = arith.addf %75, %76 : vector<8x16x16xf32>
    %cst_11 = arith.constant 2.000000e+00 : f32
    %78 = vector.broadcast %cst_11 : f32 to vector<8x16x16xf32>
    %79 = arith.mulf %78, %72 : vector<8x16x16xf32>
    %cst_12 = arith.constant 8.99999984E-4 : f32
    %80 = vector.broadcast %cst_12 : f32 to vector<8x16x16xf32>
    %81 = arith.addf %79, %80 : vector<8x16x16xf32>
    %82 = arith.mulf %77, %81 : vector<8x16x16xf32>
    %83 = arith.mulf %15, %15 : vector<8x16x16xf32>
    %84 = arith.mulf %27, %27 : vector<8x16x16xf32>
    %85 = arith.addf %83, %84 : vector<8x16x16xf32>
    %cst_13 = arith.constant 9.99999974E-5 : f32
    %86 = vector.broadcast %cst_13 : f32 to vector<8x16x16xf32>
    %87 = arith.addf %85, %86 : vector<8x16x16xf32>
    %88 = arith.addf %42, %57 : vector<8x16x16xf32>
    %cst_14 = arith.constant 8.99999984E-4 : f32
    %89 = vector.broadcast %cst_14 : f32 to vector<8x16x16xf32>
    %90 = arith.addf %88, %89 : vector<8x16x16xf32>
    %91 = arith.mulf %87, %90 : vector<8x16x16xf32>
    %92 = arith.divf %82, %91 : vector<8x16x16xf32>
    %cst_15 = arith.constant 1.000000e+00 : f32
    %93 = vector.broadcast %cst_15 : f32 to vector<8x16x16xf32>
    %94 = arith.subf %93, %92 : vector<8x16x16xf32>
    %cst_16 = arith.constant 5.000000e-01 : f32
    %95 = vector.broadcast %cst_16 : f32 to vector<8x16x16xf32>
    %96 = arith.mulf %94, %95 : vector<8x16x16xf32>
    %cst_17 = arith.constant 0.000000e+00 : f32
    %cst_18 = arith.constant 1.000000e+00 : f32
    %97 = vector.broadcast %cst_17 : f32 to vector<8x16x16xf32>
    %98 = arith.maximumf %97, %96 : vector<8x16x16xf32>
    %99 = vector.broadcast %cst_18 : f32 to vector<8x16x16xf32>
    %100 = arith.minimumf %99, %98 : vector<8x16x16xf32>
    %101 = arith.subf %2, %3 : vector<8x16x16xf32>
    %102 = math.absf %101 : vector<8x16x16xf32>
    %cst_19 = arith.constant dense<0.000000e+00> : vector<16x16xf32>
    %103 = vector.multi_reduction <add>, %102, %cst_19 [0] : vector<8x16x16xf32> to vector<16x16xf32>
    %104 = vector.shape_cast %103 : vector<16x16xf32> to vector<1x16x16xf32>
    %c0_20 = arith.constant 0 : index
    %c0_21 = arith.constant 0 : index
    %c0_22 = arith.constant 0 : index
    %105 = vector.load %arg3[%c0_20, %c0_21, %c0_22] : memref<1x16x16xf32, #tpu.memory_space<vmem>>, vector<1x16x16xf32>
    tpu.vector_store %arg3[%c0_20, %c0_21, %c0_22], %104 {strides = array<i32>} : memref<1x16x16xf32, #tpu.memory_space<vmem>>, vector<1x16x16xf32>,
    %cst_23 = arith.constant dense<0.000000e+00> : vector<16x16xf32>
    %106 = vector.multi_reduction <add>, %100, %cst_23 [0] : vector<8x16x16xf32> to vector<16x16xf32>
    %107 = vector.shape_cast %106 : vector<16x16xf32> to vector<1x16x16xf32>
    %c0_24 = arith.constant 0 : index
    %c0_25 = arith.constant 0 : index
    %c0_26 = arith.constant 0 : index
    %108 = vector.load %arg4[%c0_24, %c0_25, %c0_26] : memref<1x16x16xf32, #tpu.memory_space<vmem>>, vector<1x16x16xf32>
    tpu.vector_store %arg4[%c0_24, %c0_25, %c0_26], %107 {strides = array<i32>} : memref<1x16x16xf32, #tpu.memory_space<vmem>>, vector<1x16x16xf32>,
    return
  }
  func.func @transform_0(%arg0: i32) -> (i32, i32, i32) {
    %c0_i32 = arith.constant 0 : i32
    %c0_i32_0 = arith.constant 0 : i32
    %c0_i32_1 = arith.constant 0 : i32
    return %arg0, %c0_i32, %c0_i32_0 : i32, i32, i32
  }
  func.func @transform_1(%arg0: i32) -> (i32, i32, i32) {
    %c0_i32 = arith.constant 0 : i32
    %c0_i32_0 = arith.constant 0 : i32
    %c0_i32_1 = arith.constant 0 : i32
    return %arg0, %c0_i32, %c0_i32_0 : i32, i32, i32
  }
  func.func @transform_2(%arg0: i32) -> (i32, i32, i32) {
    %c0_i32 = arith.constant 0 : i32
    %c0_i32_0 = arith.constant 0 : i32
    %c0_i32_1 = arith.constant 0 : i32
    return %arg0, %c0_i32, %c0_i32_0 : i32, i32, i32
  }
  func.func @transform_3(%arg0: i32) -> (i32, i32, i32) {
    %c0_i32 = arith.constant 0 : i32
    %c0_i32_0 = arith.constant 0 : i32
    %c0_i32_1 = arith.constant 0 : i32
    return %arg0, %c0_i32, %c0_i32_0 : i32, i32, i32
  }
}

</mosaic_0001>

<llo_original>
// kernel: tpu_custom_call.1
$region0: #{tpu_custom_call.1}
  #allocation0 [shape = 'u32[]', space=smem, size = 0x4, offset = 0x4, fixed_abs, tag = 'smem constant byte address 0x4 - core index']
  #allocation1 [shape = 'u32[144,128]{1,0:T(1,128)}', space=vmem, size = 0x12000, scoped, tag = 'internal scratch']
  %s0 = inlined_call_operand.vmem [shape: f32[8,18,18], index: 0, kind: input, shape index: {}]
  %s1 = inlined_call_operand.vmem [shape: f32[8,18,18], index: 1, kind: input, shape index: {}]
  %s2 = inlined_call_operand.hbm [shape: f32[1,16,16], index: 2, kind: output, shape index: {0}]
  %s3 = inlined_call_operand.hbm [shape: f32[1,16,16], index: 3, kind: output, shape index: {1}]
  %4 = xla_tuple %s2, %s3
  %s5 = sld [smem:[#allocation0]]
  $region26: #{tpu_custom_call.1} parent=0
    _
  %s7 = ssub.s32 1, %s5
  %s8 = scalar_select 0, %s7, %s5
  $region1: #{tpu_custom_call.1} parent=0
    #allocation2 [shape = 'u8[8192]{0}', space=vmem, size = 0x2000, scoped, tag = 'output window, operand 0, single buffered']
    #allocation3 [shape = 's32[1]{0}', space=sflag, size = 0x4, scoped, tag = 'scoped memory for tpu_custom_call.1']
    #allocation4 [shape = 'u8[8192]{0}', space=vmem, size = 0x2000, scoped, tag = 'output window, operand 1, single buffered']
    #allocation5 [shape = 's32[1]{0}', space=sflag, size = 0x4, scoped, tag = 'scoped memory for tpu_custom_call.1']
    %9 = vsyncpa [#allocation3], 0
    %10 = vsyncpa [#allocation5], 0
    // Predicated region
    $region2: #{tpu_custom_call.1} parent=1 // pred_check
      _
    $region3: #{tpu_custom_call.1} parent=1 // pred_check_branch
      %12 = sbr.rel (0) target = $region5
    $region4: #{tpu_custom_call.1} parent=1 // pred_region
      _
    $region5: #{tpu_custom_call.1} parent=1 // pred_fallthru
      _
    // Predicated region
    $region6: #{tpu_custom_call.1} parent=1 // pred_check
      _
    $region7: #{tpu_custom_call.1} parent=1 // pred_check_branch
      %14 = sbr.rel (0) target = $region9
    $region8: #{tpu_custom_call.1} parent=1 // pred_region
      _
    $region9: #{tpu_custom_call.1} parent=1 // pred_fallthru
      _
    %v15 = vld [vmem:[%s0] sm:$0xff]
    %v16 = vld [vmem:[%s0 + $0x8] sm:$0xff]
    %v17 = vld [vmem:[%s0 + $0x10] sm:$0x3]
    %v18 = vld [vmem:[%s0 + $0x18] sm:$0xff]
    %v19 = vld [vmem:[%s0 + $0x20] sm:$0xff]
    %v20 = vld [vmem:[%s0 + $0x28] sm:$0x3]
    %v21 = vld [vmem:[%s0 + $0x30] sm:$0xff]
    %v22 = vld [vmem:[%s0 + $0x38] sm:$0xff]
    %v23 = vld [vmem:[%s0 + $0x40] sm:$0x3]
    %v24 = vld [vmem:[%s0 + $0x48] sm:$0xff]
    %v25 = vld [vmem:[%s0 + $0x50] sm:$0xff]
    %v26 = vld [vmem:[%s0 + $0x58] sm:$0x3]
    %v27 = vld [vmem:[%s0 + $0x60] sm:$0xff]
    %v28 = vld [vmem:[%s0 + $0x68] sm:$0xff]
    %v29 = vld [vmem:[%s0 + $0x70] sm:$0x3]
    %v30 = vld [vmem:[%s0 + $0x78] sm:$0xff]
    %v31 = vld [vmem:[%s0 + $0x80] sm:$0xff]
    %v32 = vld [vmem:[%s0 + $0x88] sm:$0x3]
    %v33 = vld [vmem:[%s0 + $0x90] sm:$0xff]
    %v34 = vld [vmem:[%s0 + $0x98] sm:$0xff]
    %v35 = vld [vmem:[%s0 + $0xa0] sm:$0x3]
    %v36 = vld [vmem:[%s0 + $0xa8] sm:$0xff]
    %v37 = vld [vmem:[%s0 + $0xb0] sm:$0xff]
    %v38 = vld [vmem:[%s0 + $0xb8] sm:$0x3]
    %v39 = vld [vmem:[%s1] sm:$0xff]
    %v40 = vld [vmem:[%s1 + $0x8] sm:$0xff]
    %v41 = vld [vmem:[%s1 + $0x10] sm:$0x3]
    %v42 = vld [vmem:[%s1 + $0x18] sm:$0xff]
    %v43 = vld [vmem:[%s1 + $0x20] sm:$0xff]
    %v44 = vld [vmem:[%s1 + $0x28] sm:$0x3]
    %v45 = vld [vmem:[%s1 + $0x30] sm:$0xff]
    %v46 = vld [vmem:[%s1 + $0x38] sm:$0xff]
    %v47 = vld [vmem:[%s1 + $0x40] sm:$0x3]
    %v48 = vld [vmem:[%s1 + $0x48] sm:$0xff]
    %v49 = vld [vmem:[%s1 + $0x50] sm:$0xff]
    %v50 = vld [vmem:[%s1 + $0x58] sm:$0x3]
    %v51 = vld [vmem:[%s1 + $0x60] sm:$0xff]
    %v52 = vld [vmem:[%s1 + $0x68] sm:$0xff]
    %v53 = vld [vmem:[%s1 + $0x70] sm:$0x3]
    %v54 = vld [vmem:[%s1 + $0x78] sm:$0xff]
    %v55 = vld [vmem:[%s1 + $0x80] sm:$0xff]
    %v56 = vld [vmem:[%s1 + $0x88] sm:$0x3]
    %v57 = vld [vmem:[%s1 + $0x90] sm:$0xff]
    %v58 = vld [vmem:[%s1 + $0x98] sm:$0xff]
    %v59 = vld [vmem:[%s1 + $0xa0] sm:$0x3]
    %v60 = vld [vmem:[%s1 + $0xa8] sm:$0xff]
    %v61 = vld [vmem:[%s1 + $0xb0] sm:$0xff]
    %v62 = vld [vmem:[%s1 + $0xb8] sm:$0x3]
    %87 = vrot.lane.b32.xlu0 %v15, 127
    %v88 = vpop.permute.xlu0 %87
    %89 = vrot.lane.b32.xlu0 %v16, 127
    %v90 = vpop.permute.xlu0 %89
    %91 = vrot.lane.b32.xlu0 %v17, 127
    %v92 = vpop.permute.xlu0 %91
    %93 = vrot.lane.b32.xlu0 %v18, 127
    %v94 = vpop.permute.xlu0 %93
    %95 = vrot.lane.b32.xlu0 %v19, 127
    %v96 = vpop.permute.xlu0 %95
    %97 = vrot.lane.b32.xlu0 %v20, 127
    %v98 = vpop.permute.xlu0 %97
    %99 = vrot.lane.b32.xlu0 %v21, 127
    %v100 = vpop.permute.xlu0 %99
    %101 = vrot.lane.b32.xlu0 %v22, 127
    %v102 = vpop.permute.xlu0 %101
    %103 = vrot.lane.b32.xlu0 %v23, 127
    %v104 = vpop.permute.xlu0 %103
    %105 = vrot.lane.b32.xlu0 %v24, 127
    %v106 = vpop.permute.xlu0 %105
    %107 = vrot.lane.b32.xlu0 %v25, 127
    %v108 = vpop.permute.xlu0 %107
    %109 = vrot.lane.b32.xlu0 %v26, 127
    %v110 = vpop.permute.xlu0 %109
    %111 = vrot.lane.b32.xlu0 %v27, 127
    %v112 = vpop.permute.xlu0 %111
    %113 = vrot.lane.b32.xlu0 %v28, 127
    %v114 = vpop.permute.xlu0 %113
    %115 = vrot.lane.b32.xlu0 %v29, 127
    %v116 = vpop.permute.xlu0 %115
    %117 = vrot.lane.b32.xlu0 %v30, 127
    %v118 = vpop.permute.xlu0 %117
    %119 = vrot.lane.b32.xlu0 %v31, 127
    %v120 = vpop.permute.xlu0 %119
    %121 = vrot.lane.b32.xlu0 %v32, 127
    %v122 = vpop.permute.xlu0 %121
    %123 = vrot.lane.b32.xlu0 %v33, 127
    %v124 = vpop.permute.xlu0 %123
    %125 = vrot.lane.b32.xlu0 %v34, 127
    %v126 = vpop.permute.xlu0 %125
    %127 = vrot.lane.b32.xlu0 %v35, 127
    %v128 = vpop.permute.xlu0 %127
    %129 = vrot.lane.b32.xlu0 %v36, 127
    %v130 = vpop.permute.xlu0 %129
    %131 = vrot.lane.b32.xlu0 %v37, 127
    %v132 = vpop.permute.xlu0 %131
    %133 = vrot.lane.b32.xlu0 %v38, 127
    %v134 = vpop.permute.xlu0 %133
    %v159 = vadd.f32 %v15, %v88
    %v160 = vadd.f32 %v16, %v90
    %v161 = vadd.f32 %v17, %v92
    %v162 = vadd.f32 %v18, %v94
    %v163 = vadd.f32 %v19, %v96
    %v164 = vadd.f32 %v20, %v98
    %v165 = vadd.f32 %v21, %v100
    %v166 = vadd.f32 %v22, %v102
    %v167 = vadd.f32 %v23, %v104
    %v168 = vadd.f32 %v24, %v106
    %v169 = vadd.f32 %v25, %v108
    %v170 = vadd.f32 %v26, %v110
    %v171 = vadd.f32 %v27, %v112
    %v172 = vadd.f32 %v28, %v114
    %v173 = vadd.f32 %v29, %v116
    %v174 = vadd.f32 %v30, %v118
    %v175 = vadd.f32 %v31, %v120
    %v176 = vadd.f32 %v32, %v122
    %v177 = vadd.f32 %v33, %v124
    %v178 = vadd.f32 %v34, %v126
    %v179 = vadd.f32 %v35, %v128
    %v180 = vadd.f32 %v36, %v130
    %v181 = vadd.f32 %v37, %v132
    %v182 = vadd.f32 %v38, %v134
    %183 = vrot.lane.b32.xlu0 %v15, 126
    %v184 = vpop.permute.xlu0 %183
    %185 = vrot.lane.b32.xlu0 %v16, 126
    %v186 = vpop.permute.xlu0 %185
    %187 = vrot.lane.b32.xlu0 %v17, 126
    %v188 = vpop.permute.xlu0 %187
    %189 = vrot.lane.b32.xlu0 %v18, 126
    %v190 = vpop.permute.xlu0 %189
    %191 = vrot.lane.b32.xlu0 %v19, 126
    %v192 = vpop.permute.xlu0 %191
    %193 = vrot.lane.b32.xlu0 %v20, 126
    %v194 = vpop.permute.xlu0 %193
    %195 = vrot.lane.b32.xlu0 %v21, 126
    %v196 = vpop.permute.xlu0 %195
    %197 = vrot.lane.b32.xlu0 %v22, 126
    %v198 = vpop.permute.xlu0 %197
    %199 = vrot.lane.b32.xlu0 %v23, 126
    %v200 = vpop.permute.xlu0 %199
    %201 = vrot.lane.b32.xlu0 %v24, 126
    %v202 = vpop.permute.xlu0 %201
    %203 = vrot.lane.b32.xlu0 %v25, 126
    %v204 = vpop.permute.xlu0 %203
    %205 = vrot.lane.b32.xlu0 %v26, 126
    %v206 = vpop.permute.xlu0 %205
    %207 = vrot.lane.b32.xlu0 %v27, 126
    %v208 = vpop.permute.xlu0 %207
    %209 = vrot.lane.b32.xlu0 %v28, 126
    %v210 = vpop.permute.xlu0 %209
    %211 = vrot.lane.b32.xlu0 %v29, 126
    %v212 = vpop.permute.xlu0 %211
    %213 = vrot.lane.b32.xlu0 %v30, 126
    %v214 = vpop.permute.xlu0 %213
    %215 = vrot.lane.b32.xlu0 %v31, 126
    %v216 = vpop.permute.xlu0 %215
    %217 = vrot.lane.b32.xlu0 %v32, 126
    %v218 = vpop.permute.xlu0 %217
    %219 = vrot.lane.b32.xlu0 %v33, 126
    %v220 = vpop.permute.xlu0 %219
    %221 = vrot.lane.b32.xlu0 %v34, 126
    %v222 = vpop.permute.xlu0 %221
    %223 = vrot.lane.b32.xlu0 %v35, 126
    %v224 = vpop.permute.xlu0 %223
    %225 = vrot.lane.b32.xlu0 %v36, 126
    %v226 = vpop.permute.xlu0 %225
    %227 = vrot.lane.b32.xlu0 %v37, 126
    %v228 = vpop.permute.xlu0 %227
    %229 = vrot.lane.b32.xlu0 %v38, 126
    %v230 = vpop.permute.xlu0 %229
    %v255 = vadd.f32 %v159, %v184
    %v256 = vadd.f32 %v160, %v186
    %v257 = vadd.f32 %v161, %v188
    %v258 = vadd.f32 %v162, %v190
    %v259 = vadd.f32 %v163, %v192
    %v260 = vadd.f32 %v164, %v194
    %v261 = vadd.f32 %v165, %v196
    %v262 = vadd.f32 %v166, %v198
    %v263 = vadd.f32 %v167, %v200
    %v264 = vadd.f32 %v168, %v202
    %v265 = vadd.f32 %v169, %v204
    %v266 = vadd.f32 %v170, %v206
    %v267 = vadd.f32 %v171, %v208
    %v268 = vadd.f32 %v172, %v210
    %v269 = vadd.f32 %v173, %v212
    %v270 = vadd.f32 %v174, %v214
    %v271 = vadd.f32 %v175, %v216
    %v272 = vadd.f32 %v176, %v218
    %v273 = vadd.f32 %v177, %v220
    %v274 = vadd.f32 %v178, %v222
    %v275 = vadd.f32 %v179, %v224
    %v276 = vadd.f32 %v180, %v226
    %v277 = vadd.f32 %v181, %v228
    %v278 = vadd.f32 %v182, %v230
    %vm303 = vcmask 1046528
    %v304 = vrot.slane %v255, 1
    %v305 = vrot.slane %v256, 1
    %v306 = vsel %vm303, %v304, %v305
    %v307 = vrot.slane %v257, 1
    %v308 = vsel %vm303, %v305, %v307
    %v309 = vrot.slane %v258, 1
    %v310 = vrot.slane %v259, 1
    %v311 = vsel %vm303, %v309, %v310
    %v312 = vrot.slane %v260, 1
    %v313 = vsel %vm303, %v310, %v312
    %v314 = vrot.slane %v261, 1
    %v315 = vrot.slane %v262, 1
    %v316 = vsel %vm303, %v314, %v315
    %v317 = vrot.slane %v263, 1
    %v318 = vsel %vm303, %v315, %v317
    %v319 = vrot.slane %v264, 1
    %v320 = vrot.slane %v265, 1
    %v321 = vsel %vm303, %v319, %v320
    %v322 = vrot.slane %v266, 1
    %v323 = vsel %vm303, %v320, %v322
    %v324 = vrot.slane %v267, 1
    %v325 = vrot.slane %v268, 1
    %v326 = vsel %vm303, %v324, %v325
    %v327 = vrot.slane %v269, 1
    %v328 = vsel %vm303, %v325, %v327
    %v329 = vrot.slane %v270, 1
    %v330 = vrot.slane %v271, 1
    %v331 = vsel %vm303, %v329, %v330
    %v332 = vrot.slane %v272, 1
    %v333 = vsel %vm303, %v330, %v332
    %v334 = vrot.slane %v273, 1
    %v335 = vrot.slane %v274, 1
    %v336 = vsel %vm303, %v334, %v335
    %v337 = vrot.slane %v275, 1
    %v338 = vsel %vm303, %v335, %v337
    %v339 = vrot.slane %v276, 1
    %v340 = vrot.slane %v277, 1
    %v341 = vsel %vm303, %v339, %v340
    %v342 = vrot.slane %v278, 1
    %v343 = vsel %vm303, %v340, %v342
    %v360 = vadd.f32 %v255, %v306
    %v361 = vadd.f32 %v256, %v308
    %v362 = vadd.f32 %v258, %v311
    %v363 = vadd.f32 %v259, %v313
    %v364 = vadd.f32 %v261, %v316
    %v365 = vadd.f32 %v262, %v318
    %v366 = vadd.f32 %v264, %v321
    %v367 = vadd.f32 %v265, %v323
    %v368 = vadd.f32 %v267, %v326
    %v369 = vadd.f32 %v268, %v328
    %v370 = vadd.f32 %v270, %v331
    %v371 = vadd.f32 %v271, %v333
    %v372 = vadd.f32 %v273, %v336
    %v373 = vadd.f32 %v274, %v338
    %v374 = vadd.f32 %v276, %v341
    %v375 = vadd.f32 %v277, %v343
    %vm376 = vcmask 1045504
    %v377 = vrot.slane %v255, 2
    %v378 = vrot.slane %v256, 2
    %v379 = vsel %vm376, %v377, %v378
    %v380 = vrot.slane %v257, 2
    %v381 = vsel %vm376, %v378, %v380
    %v382 = vrot.slane %v258, 2
    %v383 = vrot.slane %v259, 2
    %v384 = vsel %vm376, %v382, %v383
    %v385 = vrot.slane %v260, 2
    %v386 = vsel %vm376, %v383, %v385
    %v387 = vrot.slane %v261, 2
    %v388 = vrot.slane %v262, 2
    %v389 = vsel %vm376, %v387, %v388
    %v390 = vrot.slane %v263, 2
    %v391 = vsel %vm376, %v388, %v390
    %v392 = vrot.slane %v264, 2
    %v393 = vrot.slane %v265, 2
    %v394 = vsel %vm376, %v392, %v393
    %v395 = vrot.slane %v266, 2
    %v396 = vsel %vm376, %v393, %v395
    %v397 = vrot.slane %v267, 2
    %v398 = vrot.slane %v268, 2
    %v399 = vsel %vm376, %v397, %v398
    %v400 = vrot.slane %v269, 2
    %v401 = vsel %vm376, %v398, %v400
    %v402 = vrot.slane %v270, 2
    %v403 = vrot.slane %v271, 2
    %v404 = vsel %vm376, %v402, %v403
    %v405 = vrot.slane %v272, 2
    %v406 = vsel %vm376, %v403, %v405
    %v407 = vrot.slane %v273, 2
    %v408 = vrot.slane %v274, 2
    %v409 = vsel %vm376, %v407, %v408
    %v410 = vrot.slane %v275, 2
    %v411 = vsel %vm376, %v408, %v410
    %v412 = vrot.slane %v276, 2
    %v413 = vrot.slane %v277, 2
    %v414 = vsel %vm376, %v412, %v413
    %v415 = vrot.slane %v278, 2
    %v416 = vsel %vm376, %v413, %v415
    %v433 = vadd.f32 %v360, %v379
    %v434 = vadd.f32 %v361, %v381
    %v435 = vadd.f32 %v362, %v384
    %v436 = vadd.f32 %v363, %v386
    %v437 = vadd.f32 %v364, %v389
    %v438 = vadd.f32 %v365, %v391
    %v439 = vadd.f32 %v366, %v394
    %v440 = vadd.f32 %v367, %v396
    %v441 = vadd.f32 %v368, %v399
    %v442 = vadd.f32 %v369, %v401
    %v443 = vadd.f32 %v370, %v404
    %v444 = vadd.f32 %v371, %v406
    %v445 = vadd.f32 %v372, %v409
    %v446 = vadd.f32 %v373, %v411
    %v447 = vadd.f32 %v374, %v414
    %v448 = vadd.f32 %v375, %v416
    %v449 = vmul.f32 %v433, 0.11111111
    %v450 = vmul.f32 %v434, 0.11111111
    %v451 = vmul.f32 %v435, 0.11111111
    %v452 = vmul.f32 %v436, 0.11111111
    %v453 = vmul.f32 %v437, 0.11111111
    %v454 = vmul.f32 %v438, 0.11111111
    %v455 = vmul.f32 %v439, 0.11111111
    %v456 = vmul.f32 %v440, 0.11111111
    %v457 = vmul.f32 %v441, 0.11111111
    %v458 = vmul.f32 %v442, 0.11111111
    %v459 = vmul.f32 %v443, 0.11111111
    %v460 = vmul.f32 %v444, 0.11111111
    %v461 = vmul.f32 %v445, 0.11111111
    %v462 = vmul.f32 %v446, 0.11111111
    %v463 = vmul.f32 %v447, 0.11111111
    %v464 = vmul.f32 %v448, 0.11111111
    %489 = vrot.lane.b32.xlu0 %v39, 127
    %v490 = vpop.permute.xlu0 %489
    %491 = vrot.lane.b32.xlu0 %v40, 127
    %v492 = vpop.permute.xlu0 %491
    %493 = vrot.lane.b32.xlu0 %v41, 127
    %v494 = vpop.permute.xlu0 %493
    %495 = vrot.lane.b32.xlu0 %v42, 127
    %v496 = vpop.permute.xlu0 %495
    %497 = vrot.lane.b32.xlu0 %v43, 127
    %v498 = vpop.permute.xlu0 %497
    %499 = vrot.lane.b32.xlu0 %v44, 127
    %v500 = vpop.permute.xlu0 %499
    %501 = vrot.lane.b32.xlu0 %v45, 127
    %v502 = vpop.permute.xlu0 %501
    %503 = vrot.lane.b32.xlu0 %v46, 127
    %v504 = vpop.permute.xlu0 %503
    %505 = vrot.lane.b32.xlu0 %v47, 127
    %v506 = vpop.permute.xlu0 %505
    %507 = vrot.lane.b32.xlu0 %v48, 127
    %v508 = vpop.permute.xlu0 %507
    %509 = vrot.lane.b32.xlu0 %v49, 127
    %v510 = vpop.permute.xlu0 %509
    %511 = vrot.lane.b32.xlu0 %v50, 127
    %v512 = vpop.permute.xlu0 %511
    %513 = vrot.lane.b32.xlu0 %v51, 127
    %v514 = vpop.permute.xlu0 %513
    %515 = vrot.lane.b32.xlu0 %v52, 127
    %v516 = vpop.permute.xlu0 %515
    %517 = vrot.lane.b32.xlu0 %v53, 127
    %v518 = vpop.permute.xlu0 %517
    %519 = vrot.lane.b32.xlu0 %v54, 127
    %v520 = vpop.permute.xlu0 %519
    %521 = vrot.lane.b32.xlu0 %v55, 127
    %v522 = vpop.permute.xlu0 %521
    %523 = vrot.lane.b32.xlu0 %v56, 127
    %v524 = vpop.permute.xlu0 %523
    %525 = vrot.lane.b32.xlu0 %v57, 127
    %v526 = vpop.permute.xlu0 %525
    %527 = vrot.lane.b32.xlu0 %v58, 127
    %v528 = vpop.permute.xlu0 %527
    %529 = vrot.lane.b32.xlu0 %v59, 127
    %v530 = vpop.permute.xlu0 %529
    %531 = vrot.lane.b32.xlu0 %v60, 127
    %v532 = vpop.permute.xlu0 %531
    %533 = vrot.lane.b32.xlu0 %v61, 127
    %v534 = vpop.permute.xlu0 %533
    %535 = vrot.lane.b32.xlu0 %v62, 127
    %v536 = vpop.permute.xlu0 %535
    %v561 = vadd.f32 %v39, %v490
    %v562 = vadd.f32 %v40, %v492
    %v563 = vadd.f32 %v41, %v494
    %v564 = vadd.f32 %v42, %v496
    %v565 = vadd.f32 %v43, %v498
    %v566 = vadd.f32 %v44, %v500
    %v567 = vadd.f32 %v45, %v502
    %v568 = vadd.f32 %v46, %v504
    %v569 = vadd.f32 %v47, %v506
    %v570 = vadd.f32 %v48, %v508
    %v571 = vadd.f32 %v49, %v510
    %v572 = vadd.f32 %v50, %v512
    %v573 = vadd.f32 %v51, %v514
    %v574 = vadd.f32 %v52, %v516
    %v575 = vadd.f32 %v53, %v518
    %v576 = vadd.f32 %v54, %v520
    %v577 = vadd.f32 %v55, %v522
    %v578 = vadd.f32 %v56, %v524
    %v579 = vadd.f32 %v57, %v526
    %v580 = vadd.f32 %v58, %v528
    %v581 = vadd.f32 %v59, %v530
    %v582 = vadd.f32 %v60, %v532
    %v583 = vadd.f32 %v61, %v534
    %v584 = vadd.f32 %v62, %v536
    %585 = vrot.lane.b32.xlu0 %v39, 126
    %v586 = vpop.permute.xlu0 %585
    %587 = vrot.lane.b32.xlu0 %v40, 126
    %v588 = vpop.permute.xlu0 %587
    %589 = vrot.lane.b32.xlu0 %v41, 126
    %v590 = vpop.permute.xlu0 %589
    %591 = vrot.lane.b32.xlu0 %v42, 126
    %v592 = vpop.permute.xlu0 %591
    %593 = vrot.lane.b32.xlu0 %v43, 126
    %v594 = vpop.permute.xlu0 %593
    %595 = vrot.lane.b32.xlu0 %v44, 126
    %v596 = vpop.permute.xlu0 %595
    %597 = vrot.lane.b32.xlu0 %v45, 126
    %v598 = vpop.permute.xlu0 %597
    %599 = vrot.lane.b32.xlu0 %v46, 126
    %v600 = vpop.permute.xlu0 %599
    %601 = vrot.lane.b32.xlu0 %v47, 126
    %v602 = vpop.permute.xlu0 %601
    %603 = vrot.lane.b32.xlu0 %v48, 126
    %v604 = vpop.permute.xlu0 %603
    %605 = vrot.lane.b32.xlu0 %v49, 126
    %v606 = vpop.permute.xlu0 %605
    %607 = vrot.lane.b32.xlu0 %v50, 126
    %v608 = vpop.permute.xlu0 %607
    %609 = vrot.lane.b32.xlu0 %v51, 126
    %v610 = vpop.permute.xlu0 %609
    %611 = vrot.lane.b32.xlu0 %v52, 126
    %v612 = vpop.permute.xlu0 %611
    %613 = vrot.lane.b32.xlu0 %v53, 126
    %v614 = vpop.permute.xlu0 %613
    %615 = vrot.lane.b32.xlu0 %v54, 126
    %v616 = vpop.permute.xlu0 %615
    %617 = vrot.lane.b32.xlu0 %v55, 126
    %v618 = vpop.permute.xlu0 %617
    %619 = vrot.lane.b32.xlu0 %v56, 126
    %v620 = vpop.permute.xlu0 %619
    %621 = vrot.lane.b32.xlu0 %v57, 126
    %v622 = vpop.permute.xlu0 %621
    %623 = vrot.lane.b32.xlu0 %v58, 126
    %v624 = vpop.permute.xlu0 %623
    %625 = vrot.lane.b32.xlu0 %v59, 126
    %v626 = vpop.permute.xlu0 %625
    %627 = vrot.lane.b32.xlu0 %v60, 126
    %v628 = vpop.permute.xlu0 %627
    %629 = vrot.lane.b32.xlu0 %v61, 126
    %v630 = vpop.permute.xlu0 %629
    %631 = vrot.lane.b32.xlu0 %v62, 126
    %v632 = vpop.permute.xlu0 %631
    %v657 = vadd.f32 %v561, %v586
    %v658 = vadd.f32 %v562, %v588
    %v659 = vadd.f32 %v563, %v590
    %v660 = vadd.f32 %v564, %v592
    %v661 = vadd.f32 %v565, %v594
    %v662 = vadd.f32 %v566, %v596
    %v663 = vadd.f32 %v567, %v598
    %v664 = vadd.f32 %v568, %v600
    %v665 = vadd.f32 %v569, %v602
    %v666 = vadd.f32 %v570, %v604
    %v667 = vadd.f32 %v571, %v606
    %v668 = vadd.f32 %v572, %v608
    %v669 = vadd.f32 %v573, %v610
    %v670 = vadd.f32 %v574, %v612
    %v671 = vadd.f32 %v575, %v614
    %v672 = vadd.f32 %v576, %v616
    %v673 = vadd.f32 %v577, %v618
    %v674 = vadd.f32 %v578, %v620
    %v675 = vadd.f32 %v579, %v622
    %v676 = vadd.f32 %v580, %v624
    %v677 = vadd.f32 %v581, %v626
    %v678 = vadd.f32 %v582, %v628
    %v679 = vadd.f32 %v583, %v630
    %v680 = vadd.f32 %v584, %v632
    %v705 = vrot.slane %v657, 1
    %v706 = vrot.slane %v658, 1
    %v707 = vsel %vm303, %v705, %v706
    %v708 = vrot.slane %v659, 1
    %v709 = vsel %vm303, %v706, %v708
    %v710 = vrot.slane %v660, 1
    %v711 = vrot.slane %v661, 1
    %v712 = vsel %vm303, %v710, %v711
    %v713 = vrot.slane %v662, 1
    %v714 = vsel %vm303, %v711, %v713
    %v715 = vrot.slane %v663, 1
    %v716 = vrot.slane %v664, 1
    %v717 = vsel %vm303, %v715, %v716
    %v718 = vrot.slane %v665, 1
    %v719 = vsel %vm303, %v716, %v718
    %v720 = vrot.slane %v666, 1
    %v721 = vrot.slane %v667, 1
    %v722 = vsel %vm303, %v720, %v721
    %v723 = vrot.slane %v668, 1
    %v724 = vsel %vm303, %v721, %v723
    %v725 = vrot.slane %v669, 1
    %v726 = vrot.slane %v670, 1
    %v727 = vsel %vm303, %v725, %v726
    %v728 = vrot.slane %v671, 1
    %v729 = vsel %vm303, %v726, %v728
    %v730 = vrot.slane %v672, 1
    %v731 = vrot.slane %v673, 1
    %v732 = vsel %vm303, %v730, %v731
    %v733 = vrot.slane %v674, 1
    %v734 = vsel %vm303, %v731, %v733
    %v735 = vrot.slane %v675, 1
    %v736 = vrot.slane %v676, 1
    %v737 = vsel %vm303, %v735, %v736
    %v738 = vrot.slane %v677, 1
    %v739 = vsel %vm303, %v736, %v738
    %v740 = vrot.slane %v678, 1
    %v741 = vrot.slane %v679, 1
    %v742 = vsel %vm303, %v740, %v741
    %v743 = vrot.slane %v680, 1
    %v744 = vsel %vm303, %v741, %v743
    %v761 = vadd.f32 %v657, %v707
    %v762 = vadd.f32 %v658, %v709
    %v763 = vadd.f32 %v660, %v712
    %v764 = vadd.f32 %v661, %v714
    %v765 = vadd.f32 %v663, %v717
    %v766 = vadd.f32 %v664, %v719
    %v767 = vadd.f32 %v666, %v722
    %v768 = vadd.f32 %v667, %v724
    %v769 = vadd.f32 %v669, %v727
    %v770 = vadd.f32 %v670, %v729
    %v771 = vadd.f32 %v672, %v732
    %v772 = vadd.f32 %v673, %v734
    %v773 = vadd.f32 %v675, %v737
    %v774 = vadd.f32 %v676, %v739
    %v775 = vadd.f32 %v678, %v742
    %v776 = vadd.f32 %v679, %v744
    %v777 = vrot.slane %v657, 2
    %v778 = vrot.slane %v658, 2
    %v779 = vsel %vm376, %v777, %v778
    %v780 = vrot.slane %v659, 2
    %v781 = vsel %vm376, %v778, %v780
    %v782 = vrot.slane %v660, 2
    %v783 = vrot.slane %v661, 2
    %v784 = vsel %vm376, %v782, %v783
    %v785 = vrot.slane %v662, 2
    %v786 = vsel %vm376, %v783, %v785
    %v787 = vrot.slane %v663, 2
    %v788 = vrot.slane %v664, 2
    %v789 = vsel %vm376, %v787, %v788
    %v790 = vrot.slane %v665, 2
    %v791 = vsel %vm376, %v788, %v790
    %v792 = vrot.slane %v666, 2
    %v793 = vrot.slane %v667, 2
    %v794 = vsel %vm376, %v792, %v793
    %v795 = vrot.slane %v668, 2
    %v796 = vsel %vm376, %v793, %v795
    %v797 = vrot.slane %v669, 2
    %v798 = vrot.slane %v670, 2
    %v799 = vsel %vm376, %v797, %v798
    %v800 = vrot.slane %v671, 2
    %v801 = vsel %vm376, %v798, %v800
    %v802 = vrot.slane %v672, 2
    %v803 = vrot.slane %v673, 2
    %v804 = vsel %vm376, %v802, %v803
    %v805 = vrot.slane %v674, 2
    %v806 = vsel %vm376, %v803, %v805
    %v807 = vrot.slane %v675, 2
    %v808 = vrot.slane %v676, 2
    %v809 = vsel %vm376, %v807, %v808
    %v810 = vrot.slane %v677, 2
    %v811 = vsel %vm376, %v808, %v810
    %v812 = vrot.slane %v678, 2
    %v813 = vrot.slane %v679, 2
    %v814 = vsel %vm376, %v812, %v813
    %v815 = vrot.slane %v680, 2
    %v816 = vsel %vm376, %v813, %v815
    %v833 = vadd.f32 %v761, %v779
    %v834 = vadd.f32 %v762, %v781
    %v835 = vadd.f32 %v763, %v784
    %v836 = vadd.f32 %v764, %v786
    %v837 = vadd.f32 %v765, %v789
    %v838 = vadd.f32 %v766, %v791
    %v839 = vadd.f32 %v767, %v794
    %v840 = vadd.f32 %v768, %v796
    %v841 = vadd.f32 %v769, %v799
    %v842 = vadd.f32 %v770, %v801
    %v843 = vadd.f32 %v771, %v804
    %v844 = vadd.f32 %v772, %v806
    %v845 = vadd.f32 %v773, %v809
    %v846 = vadd.f32 %v774, %v811
    %v847 = vadd.f32 %v775, %v814
    %v848 = vadd.f32 %v776, %v816
    %v849 = vmul.f32 %v833, 0.11111111
    %v850 = vmul.f32 %v834, 0.11111111
    %v851 = vmul.f32 %v835, 0.11111111
    %v852 = vmul.f32 %v836, 0.11111111
    %v853 = vmul.f32 %v837, 0.11111111
    %v854 = vmul.f32 %v838, 0.11111111
    %v855 = vmul.f32 %v839, 0.11111111
    %v856 = vmul.f32 %v840, 0.11111111
    %v857 = vmul.f32 %v841, 0.11111111
    %v858 = vmul.f32 %v842, 0.11111111
    %v859 = vmul.f32 %v843, 0.11111111
    %v860 = vmul.f32 %v844, 0.11111111
    %v861 = vmul.f32 %v845, 0.11111111
    %v862 = vmul.f32 %v846, 0.11111111
    %v863 = vmul.f32 %v847, 0.11111111
    %v864 = vmul.f32 %v848, 0.11111111
    %v865 = vmul.f32 %v15, %v15
    %v866 = vmul.f32 %v16, %v16
    %v867 = vmul.f32 %v17, %v17
    %v868 = vmul.f32 %v18, %v18
    %v869 = vmul.f32 %v19, %v19
    %v870 = vmul.f32 %v20, %v20
    %v871 = vmul.f32 %v21, %v21
    %v872 = vmul.f32 %v22, %v22
    %v873 = vmul.f32 %v23, %v23
    %v874 = vmul.f32 %v24, %v24
    %v875 = vmul.f32 %v25, %v25
    %v876 = vmul.f32 %v26, %v26
    %v877 = vmul.f32 %v27, %v27
    %v878 = vmul.f32 %v28, %v28
    %v879 = vmul.f32 %v29, %v29
    %v880 = vmul.f32 %v30, %v30
    %v881 = vmul.f32 %v31, %v31
    %v882 = vmul.f32 %v32, %v32
    %v883 = vmul.f32 %v33, %v33
    %v884 = vmul.f32 %v34, %v34
    %v885 = vmul.f32 %v35, %v35
    %v886 = vmul.f32 %v36, %v36
    %v887 = vmul.f32 %v37, %v37
    %v888 = vmul.f32 %v38, %v38
    %913 = vrot.lane.b32.xlu0 %v865, 127
    %v914 = vpop.permute.xlu0 %913
    %915 = vrot.lane.b32.xlu0 %v866, 127
    %v916 = vpop.permute.xlu0 %915
    %917 = vrot.lane.b32.xlu0 %v867, 127
    %v918 = vpop.permute.xlu0 %917
    %919 = vrot.lane.b32.xlu0 %v868, 127
    %v920 = vpop.permute.xlu0 %919
    %921 = vrot.lane.b32.xlu0 %v869, 127
    %v922 = vpop.permute.xlu0 %921
    %923 = vrot.lane.b32.xlu0 %v870, 127
    %v924 = vpop.permute.xlu0 %923
    %925 = vrot.lane.b32.xlu0 %v871, 127
    %v926 = vpop.permute.xlu0 %925
    %927 = vrot.lane.b32.xlu0 %v872, 127
    %v928 = vpop.permute.xlu0 %927
    %929 = vrot.lane.b32.xlu0 %v873, 127
    %v930 = vpop.permute.xlu0 %929
    %931 = vrot.lane.b32.xlu0 %v874, 127
    %v932 = vpop.permute.xlu0 %931
    %933 = vrot.lane.b32.xlu0 %v875, 127
    %v934 = vpop.permute.xlu0 %933
    %935 = vrot.lane.b32.xlu0 %v876, 127
    %v936 = vpop.permute.xlu0 %935
    %937 = vrot.lane.b32.xlu0 %v877, 127
    %v938 = vpop.permute.xlu0 %937
    %939 = vrot.lane.b32.xlu0 %v878, 127
    %v940 = vpop.permute.xlu0 %939
    %941 = vrot.lane.b32.xlu0 %v879, 127
    %v942 = vpop.permute.xlu0 %941
    %943 = vrot.lane.b32.xlu0 %v880, 127
    %v944 = vpop.permute.xlu0 %943
    %945 = vrot.lane.b32.xlu0 %v881, 127
    %v946 = vpop.permute.xlu0 %945
    %947 = vrot.lane.b32.xlu0 %v882, 127
    %v948 = vpop.permute.xlu0 %947
    %949 = vrot.lane.b32.xlu0 %v883, 127
    %v950 = vpop.permute.xlu0 %949
    %951 = vrot.lane.b32.xlu0 %v884, 127
    %v952 = vpop.permute.xlu0 %951
    %953 = vrot.lane.b32.xlu0 %v885, 127
    %v954 = vpop.permute.xlu0 %953
    %955 = vrot.lane.b32.xlu0 %v886, 127
    %v956 = vpop.permute.xlu0 %955
    %957 = vrot.lane.b32.xlu0 %v887, 127
    %v958 = vpop.permute.xlu0 %957
    %959 = vrot.lane.b32.xlu0 %v888, 127
    %v960 = vpop.permute.xlu0 %959
    %v985 = vadd.f32 %v865, %v914
    %v986 = vadd.f32 %v866, %v916
    %v987 = vadd.f32 %v867, %v918
    %v988 = vadd.f32 %v868, %v920
    %v989 = vadd.f32 %v869, %v922
    %v990 = vadd.f32 %v870, %v924
    %v991 = vadd.f32 %v871, %v926
    %v992 = vadd.f32 %v872, %v928
    %v993 = vadd.f32 %v873, %v930
    %v994 = vadd.f32 %v874, %v932
    %v995 = vadd.f32 %v875, %v934
    %v996 = vadd.f32 %v876, %v936
    %v997 = vadd.f32 %v877, %v938
    %v998 = vadd.f32 %v878, %v940
    %v999 = vadd.f32 %v879, %v942
    %v1000 = vadd.f32 %v880, %v944
    %v1001 = vadd.f32 %v881, %v946
    %v1002 = vadd.f32 %v882, %v948
    %v1003 = vadd.f32 %v883, %v950
    %v1004 = vadd.f32 %v884, %v952
    %v1005 = vadd.f32 %v885, %v954
    %v1006 = vadd.f32 %v886, %v956
    %v1007 = vadd.f32 %v887, %v958
    %v1008 = vadd.f32 %v888, %v960
    %1009 = vrot.lane.b32.xlu0 %v865, 126
    %v1010 = vpop.permute.xlu0 %1009
    %1011 = vrot.lane.b32.xlu0 %v866, 126
    %v1012 = vpop.permute.xlu0 %1011
    %1013 = vrot.lane.b32.xlu0 %v867, 126
    %v1014 = vpop.permute.xlu0 %1013
    %1015 = vrot.lane.b32.xlu0 %v868, 126
    %v1016 = vpop.permute.xlu0 %1015
    %1017 = vrot.lane.b32.xlu0 %v869, 126
    %v1018 = vpop.permute.xlu0 %1017
    %1019 = vrot.lane.b32.xlu0 %v870, 126
    %v1020 = vpop.permute.xlu0 %1019
    %1021 = vrot.lane.b32.xlu0 %v871, 126
    %v1022 = vpop.permute.xlu0 %1021
    %1023 = vrot.lane.b32.xlu0 %v872, 126
    %v1024 = vpop.permute.xlu0 %1023
    %1025 = vrot.lane.b32.xlu0 %v873, 126
    %v1026 = vpop.permute.xlu0 %1025
    %1027 = vrot.lane.b32.xlu0 %v874, 126
    %v1028 = vpop.permute.xlu0 %1027
    %1029 = vrot.lane.b32.xlu0 %v875, 126
    %v1030 = vpop.permute.xlu0 %1029
    %1031 = vrot.lane.b32.xlu0 %v876, 126
    %v1032 = vpop.permute.xlu0 %1031
    %1033 = vrot.lane.b32.xlu0 %v877, 126
    %v1034 = vpop.permute.xlu0 %1033
    %1035 = vrot.lane.b32.xlu0 %v878, 126
    %v1036 = vpop.permute.xlu0 %1035
    %1037 = vrot.lane.b32.xlu0 %v879, 126
    %v1038 = vpop.permute.xlu0 %1037
    %1039 = vrot.lane.b32.xlu0 %v880, 126
    %v1040 = vpop.permute.xlu0 %1039
    %1041 = vrot.lane.b32.xlu0 %v881, 126
    %v1042 = vpop.permute.xlu0 %1041
    %1043 = vrot.lane.b32.xlu0 %v882, 126
    %v1044 = vpop.permute.xlu0 %1043
    %1045 = vrot.lane.b32.xlu0 %v883, 126
    %v1046 = vpop.permute.xlu0 %1045
    %1047 = vrot.lane.b32.xlu0 %v884, 126
    %v1048 = vpop.permute.xlu0 %1047
    %1049 = vrot.lane.b32.xlu0 %v885, 126
    %v1050 = vpop.permute.xlu0 %1049
    %1051 = vrot.lane.b32.xlu0 %v886, 126
    %v1052 = vpop.permute.xlu0 %1051
    %1053 = vrot.lane.b32.xlu0 %v887, 126
    %v1054 = vpop.permute.xlu0 %1053
    %1055 = vrot.lane.b32.xlu0 %v888, 126
    %v1056 = vpop.permute.xlu0 %1055
    %v1081 = vadd.f32 %v985, %v1010
    %v1082 = vadd.f32 %v986, %v1012
    %v1083 = vadd.f32 %v987, %v1014
    %v1084 = vadd.f32 %v988, %v1016
    %v1085 = vadd.f32 %v989, %v1018
    %v1086 = vadd.f32 %v990, %v1020
    %v1087 = vadd.f32 %v991, %v1022
    %v1088 = vadd.f32 %v992, %v1024
    %v1089 = vadd.f32 %v993, %v1026
    %v1090 = vadd.f32 %v994, %v1028
    %v1091 = vadd.f32 %v995, %v1030
    %v1092 = vadd.f32 %v996, %v1032
    %v1093 = vadd.f32 %v997, %v1034
    %v1094 = vadd.f32 %v998, %v1036
    %v1095 = vadd.f32 %v999, %v1038
    %v1096 = vadd.f32 %v1000, %v1040
    %v1097 = vadd.f32 %v1001, %v1042
    %v1098 = vadd.f32 %v1002, %v1044
    %v1099 = vadd.f32 %v1003, %v1046
    %v1100 = vadd.f32 %v1004, %v1048
    %v1101 = vadd.f32 %v1005, %v1050
    %v1102 = vadd.f32 %v1006, %v1052
    %v1103 = vadd.f32 %v1007, %v1054
    %v1104 = vadd.f32 %v1008, %v1056
    %v1129 = vrot.slane %v1081, 1
    %v1130 = vrot.slane %v1082, 1
    %v1131 = vsel %vm303, %v1129, %v1130
    %v1132 = vrot.slane %v1083, 1
    %v1133 = vsel %vm303, %v1130, %v1132
    %v1134 = vrot.slane %v1084, 1
    %v1135 = vrot.slane %v1085, 1
    %v1136 = vsel %vm303, %v1134, %v1135
    %v1137 = vrot.slane %v1086, 1
    %v1138 = vsel %vm303, %v1135, %v1137
    %v1139 = vrot.slane %v1087, 1
    %v1140 = vrot.slane %v1088, 1
    %v1141 = vsel %vm303, %v1139, %v1140
    %v1142 = vrot.slane %v1089, 1
    %v1143 = vsel %vm303, %v1140, %v1142
    %v1144 = vrot.slane %v1090, 1
    %v1145 = vrot.slane %v1091, 1
    %v1146 = vsel %vm303, %v1144, %v1145
    %v1147 = vrot.slane %v1092, 1
    %v1148 = vsel %vm303, %v1145, %v1147
    %v1149 = vrot.slane %v1093, 1
    %v1150 = vrot.slane %v1094, 1
    %v1151 = vsel %vm303, %v1149, %v1150
    %v1152 = vrot.slane %v1095, 1
    %v1153 = vsel %vm303, %v1150, %v1152
    %v1154 = vrot.slane %v1096, 1
    %v1155 = vrot.slane %v1097, 1
    %v1156 = vsel %vm303, %v1154, %v1155
    %v1157 = vrot.slane %v1098, 1
    %v1158 = vsel %vm303, %v1155, %v1157
    %v1159 = vrot.slane %v1099, 1
    %v1160 = vrot.slane %v1100, 1
    %v1161 = vsel %vm303, %v1159, %v1160
    %v1162 = vrot.slane %v1101, 1
    %v1163 = vsel %vm303, %v1160, %v1162
    %v1164 = vrot.slane %v1102, 1
    %v1165 = vrot.slane %v1103, 1
    %v1166 = vsel %vm303, %v1164, %v1165
    %v1167 = vrot.slane %v1104, 1
    %v1168 = vsel %vm303, %v1165, %v1167
    %v1185 = vadd.f32 %v1081, %v1131
    %v1186 = vadd.f32 %v1082, %v1133
    %v1187 = vadd.f32 %v1084, %v1136
    %v1188 = vadd.f32 %v1085, %v1138
    %v1189 = vadd.f32 %v1087, %v1141
    %v1190 = vadd.f32 %v1088, %v1143
    %v1191 = vadd.f32 %v1090, %v1146
    %v1192 = vadd.f32 %v1091, %v1148
    %v1193 = vadd.f32 %v1093, %v1151
    %v1194 = vadd.f32 %v1094, %v1153
    %v1195 = vadd.f32 %v1096, %v1156
    %v1196 = vadd.f32 %v1097, %v1158
    %v1197 = vadd.f32 %v1099, %v1161
    %v1198 = vadd.f32 %v1100, %v1163
    %v1199 = vadd.f32 %v1102, %v1166
    %v1200 = vadd.f32 %v1103, %v1168
    %v1201 = vrot.slane %v1081, 2
    %v1202 = vrot.slane %v1082, 2
    %v1203 = vsel %vm376, %v1201, %v1202
    %v1204 = vrot.slane %v1083, 2
    %v1205 = vsel %vm376, %v1202, %v1204
    %v1206 = vrot.slane %v1084, 2
    %v1207 = vrot.slane %v1085, 2
    %v1208 = vsel %vm376, %v1206, %v1207
    %v1209 = vrot.slane %v1086, 2
    %v1210 = vsel %vm376, %v1207, %v1209
    %v1211 = vrot.slane %v1087, 2
    %v1212 = vrot.slane %v1088, 2
    %v1213 = vsel %vm376, %v1211, %v1212
    %v1214 = vrot.slane %v1089, 2
    %v1215 = vsel %vm376, %v1212, %v1214
    %v1216 = vrot.slane %v1090, 2
    %v1217 = vrot.slane %v1091, 2
    %v1218 = vsel %vm376, %v1216, %v1217
    %v1219 = vrot.slane %v1092, 2
    %v1220 = vsel %vm376, %v1217, %v1219
    %v1221 = vrot.slane %v1093, 2
    %v1222 = vrot.slane %v1094, 2
    %v1223 = vsel %vm376, %v1221, %v1222
    %v1224 = vrot.slane %v1095, 2
    %v1225 = vsel %vm376, %v1222, %v1224
    %v1226 = vrot.slane %v1096, 2
    %v1227 = vrot.slane %v1097, 2
    %v1228 = vsel %vm376, %v1226, %v1227
    %v1229 = vrot.slane %v1098, 2
    %v1230 = vsel %vm376, %v1227, %v1229
    %v1231 = vrot.slane %v1099, 2
    %v1232 = vrot.slane %v1100, 2
    %v1233 = vsel %vm376, %v1231, %v1232
    %v1234 = vrot.slane %v1101, 2
    %v1235 = vsel %vm376, %v1232, %v1234
    %v1236 = vrot.slane %v1102, 2
    %v1237 = vrot.slane %v1103, 2
    %v1238 = vsel %vm376, %v1236, %v1237
    %v1239 = vrot.slane %v1104, 2
    %v1240 = vsel %vm376, %v1237, %v1239
    %v1257 = vadd.f32 %v1185, %v1203
    %v1258 = vadd.f32 %v1186, %v1205
    %v1259 = vadd.f32 %v1187, %v1208
    %v1260 = vadd.f32 %v1188, %v1210
    %v1261 = vadd.f32 %v1189, %v1213
    %v1262 = vadd.f32 %v1190, %v1215
    %v1263 = vadd.f32 %v1191, %v1218
    %v1264 = vadd.f32 %v1192, %v1220
    %v1265 = vadd.f32 %v1193, %v1223
    %v1266 = vadd.f32 %v1194, %v1225
    %v1267 = vadd.f32 %v1195, %v1228
    %v1268 = vadd.f32 %v1196, %v1230
    %v1269 = vadd.f32 %v1197, %v1233
    %v1270 = vadd.f32 %v1198, %v1235
    %v1271 = vadd.f32 %v1199, %v1238
    %v1272 = vadd.f32 %v1200, %v1240
    %v1273 = vmul.f32 %v1257, 0.11111111
    %v1274 = vmul.f32 %v1258, 0.11111111
    %v1275 = vmul.f32 %v1259, 0.11111111
    %v1276 = vmul.f32 %v1260, 0.11111111
    %v1277 = vmul.f32 %v1261, 0.11111111
    %v1278 = vmul.f32 %v1262, 0.11111111
    %v1279 = vmul.f32 %v1263, 0.11111111
    %v1280 = vmul.f32 %v1264, 0.11111111
    %v1281 = vmul.f32 %v1265, 0.11111111
    %v1282 = vmul.f32 %v1266, 0.11111111
    %v1283 = vmul.f32 %v1267, 0.11111111
    %v1284 = vmul.f32 %v1268, 0.11111111
    %v1285 = vmul.f32 %v1269, 0.11111111
    %v1286 = vmul.f32 %v1270, 0.11111111
    %v1287 = vmul.f32 %v1271, 0.11111111
    %v1288 = vmul.f32 %v1272, 0.11111111
    %v1289 = vmul.f32 %v449, %v449
    %v1290 = vmul.f32 %v450, %v450
    %v1291 = vmul.f32 %v451, %v451
    %v1292 = vmul.f32 %v452, %v452
    %v1293 = vmul.f32 %v453, %v453
    %v1294 = vmul.f32 %v454, %v454
    %v1295 = vmul.f32 %v455, %v455
    %v1296 = vmul.f32 %v456, %v456
    %v1297 = vmul.f32 %v457, %v457
    %v1298 = vmul.f32 %v458, %v458
    %v1299 = vmul.f32 %v459, %v459
    %v1300 = vmul.f32 %v460, %v460
    %v1301 = vmul.f32 %v461, %v461
    %v1302 = vmul.f32 %v462, %v462
    %v1303 = vmul.f32 %v463, %v463
    %v1304 = vmul.f32 %v464, %v464
    %v1305 = vsub.f32 %v1273, %v1289
    %v1306 = vsub.f32 %v1274, %v1290
    %v1307 = vsub.f32 %v1275, %v1291
    %v1308 = vsub.f32 %v1276, %v1292
    %v1309 = vsub.f32 %v1277, %v1293
    %v1310 = vsub.f32 %v1278, %v1294
    %v1311 = vsub.f32 %v1279, %v1295
    %v1312 = vsub.f32 %v1280, %v1296
    %v1313 = vsub.f32 %v1281, %v1297
    %v1314 = vsub.f32 %v1282, %v1298
    %v1315 = vsub.f32 %v1283, %v1299
    %v1316 = vsub.f32 %v1284, %v1300
    %v1317 = vsub.f32 %v1285, %v1301
    %v1318 = vsub.f32 %v1286, %v1302
    %v1319 = vsub.f32 %v1287, %v1303
    %v1320 = vsub.f32 %v1288, %v1304
    %v1321 = vmul.f32 %v39, %v39
    %v1322 = vmul.f32 %v40, %v40
    %v1323 = vmul.f32 %v41, %v41
    %v1324 = vmul.f32 %v42, %v42
    %v1325 = vmul.f32 %v43, %v43
    %v1326 = vmul.f32 %v44, %v44
    %v1327 = vmul.f32 %v45, %v45
    %v1328 = vmul.f32 %v46, %v46
    %v1329 = vmul.f32 %v47, %v47
    %v1330 = vmul.f32 %v48, %v48
    %v1331 = vmul.f32 %v49, %v49
    %v1332 = vmul.f32 %v50, %v50
    %v1333 = vmul.f32 %v51, %v51
    %v1334 = vmul.f32 %v52, %v52
    %v1335 = vmul.f32 %v53, %v53
    %v1336 = vmul.f32 %v54, %v54
    %v1337 = vmul.f32 %v55, %v55
    %v1338 = vmul.f32 %v56, %v56
    %v1339 = vmul.f32 %v57, %v57
    %v1340 = vmul.f32 %v58, %v58
    %v1341 = vmul.f32 %v59, %v59
    %v1342 = vmul.f32 %v60, %v60
    %v1343 = vmul.f32 %v61, %v61
    %v1344 = vmul.f32 %v62, %v62
    %1369 = vrot.lane.b32.xlu0 %v1321, 127
    %v1370 = vpop.permute.xlu0 %1369
    %1371 = vrot.lane.b32.xlu0 %v1322, 127
    %v1372 = vpop.permute.xlu0 %1371
    %1373 = vrot.lane.b32.xlu0 %v1323, 127
    %v1374 = vpop.permute.xlu0 %1373
    %1375 = vrot.lane.b32.xlu0 %v1324, 127
    %v1376 = vpop.permute.xlu0 %1375
    %1377 = vrot.lane.b32.xlu0 %v1325, 127
    %v1378 = vpop.permute.xlu0 %1377
    %1379 = vrot.lane.b32.xlu0 %v1326, 127
    %v1380 = vpop.permute.xlu0 %1379
    %1381 = vrot.lane.b32.xlu0 %v1327, 127
    %v1382 = vpop.permute.xlu0 %1381
    %1383 = vrot.lane.b32.xlu0 %v1328, 127
    %v1384 = vpop.permute.xlu0 %1383
    %1385 = vrot.lane.b32.xlu0 %v1329, 127
    %v1386 = vpop.permute.xlu0 %1385
    %1387 = vrot.lane.b32.xlu0 %v1330, 127
    %v1388 = vpop.permute.xlu0 %1387
    %1389 = vrot.lane.b32.xlu0 %v1331, 127
    %v1390 = vpop.permute.xlu0 %1389
    %1391 = vrot.lane.b32.xlu0 %v1332, 127
    %v1392 = vpop.permute.xlu0 %1391
    %1393 = vrot.lane.b32.xlu0 %v1333, 127
    %v1394 = vpop.permute.xlu0 %1393
    %1395 = vrot.lane.b32.xlu0 %v1334, 127
    %v1396 = vpop.permute.xlu0 %1395
    %1397 = vrot.lane.b32.xlu0 %v1335, 127
    %v1398 = vpop.permute.xlu0 %1397
    %1399 = vrot.lane.b32.xlu0 %v1336, 127
    %v1400 = vpop.permute.xlu0 %1399
    %1401 = vrot.lane.b32.xlu0 %v1337, 127
    %v1402 = vpop.permute.xlu0 %1401
    %1403 = vrot.lane.b32.xlu0 %v1338, 127
    %v1404 = vpop.permute.xlu0 %1403
    %1405 = vrot.lane.b32.xlu0 %v1339, 127
    %v1406 = vpop.permute.xlu0 %1405
    %1407 = vrot.lane.b32.xlu0 %v1340, 127
    %v1408 = vpop.permute.xlu0 %1407
    %1409 = vrot.lane.b32.xlu0 %v1341, 127
    %v1410 = vpop.permute.xlu0 %1409
    %1411 = vrot.lane.b32.xlu0 %v1342, 127
    %v1412 = vpop.permute.xlu0 %1411
    %1413 = vrot.lane.b32.xlu0 %v1343, 127
    %v1414 = vpop.permute.xlu0 %1413
    %1415 = vrot.lane.b32.xlu0 %v1344, 127
    %v1416 = vpop.permute.xlu0 %1415
    %v1441 = vadd.f32 %v1321, %v1370
    %v1442 = vadd.f32 %v1322, %v1372
    %v1443 = vadd.f32 %v1323, %v1374
    %v1444 = vadd.f32 %v1324, %v1376
    %v1445 = vadd.f32 %v1325, %v1378
    %v1446 = vadd.f32 %v1326, %v1380
    %v1447 = vadd.f32 %v1327, %v1382
    %v1448 = vadd.f32 %v1328, %v1384
    %v1449 = vadd.f32 %v1329, %v1386
    %v1450 = vadd.f32 %v1330, %v1388
    %v1451 = vadd.f32 %v1331, %v1390
    %v1452 = vadd.f32 %v1332, %v1392
    %v1453 = vadd.f32 %v1333, %v1394
    %v1454 = vadd.f32 %v1334, %v1396
    %v1455 = vadd.f32 %v1335, %v1398
    %v1456 = vadd.f32 %v1336, %v1400
    %v1457 = vadd.f32 %v1337, %v1402
    %v1458 = vadd.f32 %v1338, %v1404
    %v1459 = vadd.f32 %v1339, %v1406
    %v1460 = vadd.f32 %v1340, %v1408
    %v1461 = vadd.f32 %v1341, %v1410
    %v1462 = vadd.f32 %v1342, %v1412
    %v1463 = vadd.f32 %v1343, %v1414
    %v1464 = vadd.f32 %v1344, %v1416
    %1465 = vrot.lane.b32.xlu0 %v1321, 126
    %v1466 = vpop.permute.xlu0 %1465
    %1467 = vrot.lane.b32.xlu0 %v1322, 126
    %v1468 = vpop.permute.xlu0 %1467
    %1469 = vrot.lane.b32.xlu0 %v1323, 126
    %v1470 = vpop.permute.xlu0 %1469
    %1471 = vrot.lane.b32.xlu0 %v1324, 126
    %v1472 = vpop.permute.xlu0 %1471
    %1473 = vrot.lane.b32.xlu0 %v1325, 126
    %v1474 = vpop.permute.xlu0 %1473
    %1475 = vrot.lane.b32.xlu0 %v1326, 126
    %v1476 = vpop.permute.xlu0 %1475
    %1477 = vrot.lane.b32.xlu0 %v1327, 126
    %v1478 = vpop.permute.xlu0 %1477
    %1479 = vrot.lane.b32.xlu0 %v1328, 126
    %v1480 = vpop.permute.xlu0 %1479
    %1481 = vrot.lane.b32.xlu0 %v1329, 126
    %v1482 = vpop.permute.xlu0 %1481
    %1483 = vrot.lane.b32.xlu0 %v1330, 126
    %v1484 = vpop.permute.xlu0 %1483
    %1485 = vrot.lane.b32.xlu0 %v1331, 126
    %v1486 = vpop.permute.xlu0 %1485
    %1487 = vrot.lane.b32.xlu0 %v1332, 126
    %v1488 = vpop.permute.xlu0 %1487
    %1489 = vrot.lane.b32.xlu0 %v1333, 126
    %v1490 = vpop.permute.xlu0 %1489
    %1491 = vrot.lane.b32.xlu0 %v1334, 126
    %v1492 = vpop.permute.xlu0 %1491
    %1493 = vrot.lane.b32.xlu0 %v1335, 126
    %v1494 = vpop.permute.xlu0 %1493
    %1495 = vrot.lane.b32.xlu0 %v1336, 126
    %v1496 = vpop.permute.xlu0 %1495
    %1497 = vrot.lane.b32.xlu0 %v1337, 126
    %v1498 = vpop.permute.xlu0 %1497
    %1499 = vrot.lane.b32.xlu0 %v1338, 126
    %v1500 = vpop.permute.xlu0 %1499
    %1501 = vrot.lane.b32.xlu0 %v1339, 126
    %v1502 = vpop.permute.xlu0 %1501
    %1503 = vrot.lane.b32.xlu0 %v1340, 126
    %v1504 = vpop.permute.xlu0 %1503
    %1505 = vrot.lane.b32.xlu0 %v1341, 126
    %v1506 = vpop.permute.xlu0 %1505
    %1507 = vrot.lane.b32.xlu0 %v1342, 126
    %v1508 = vpop.permute.xlu0 %1507
    %1509 = vrot.lane.b32.xlu0 %v1343, 126
    %v1510 = vpop.permute.xlu0 %1509
    %1511 = vrot.lane.b32.xlu0 %v1344, 126
    %v1512 = vpop.permute.xlu0 %1511
    %v1537 = vadd.f32 %v1441, %v1466
    %v1538 = vadd.f32 %v1442, %v1468
    %v1539 = vadd.f32 %v1443, %v1470
    %v1540 = vadd.f32 %v1444, %v1472
    %v1541 = vadd.f32 %v1445, %v1474
    %v1542 = vadd.f32 %v1446, %v1476
    %v1543 = vadd.f32 %v1447, %v1478
    %v1544 = vadd.f32 %v1448, %v1480
    %v1545 = vadd.f32 %v1449, %v1482
    %v1546 = vadd.f32 %v1450, %v1484
    %v1547 = vadd.f32 %v1451, %v1486
    %v1548 = vadd.f32 %v1452, %v1488
    %v1549 = vadd.f32 %v1453, %v1490
    %v1550 = vadd.f32 %v1454, %v1492
    %v1551 = vadd.f32 %v1455, %v1494
    %v1552 = vadd.f32 %v1456, %v1496
    %v1553 = vadd.f32 %v1457, %v1498
    %v1554 = vadd.f32 %v1458, %v1500
    %v1555 = vadd.f32 %v1459, %v1502
    %v1556 = vadd.f32 %v1460, %v1504
    %v1557 = vadd.f32 %v1461, %v1506
    %v1558 = vadd.f32 %v1462, %v1508
    %v1559 = vadd.f32 %v1463, %v1510
    %v1560 = vadd.f32 %v1464, %v1512
    %v1585 = vrot.slane %v1537, 1
    %v1586 = vrot.slane %v1538, 1
    %v1587 = vsel %vm303, %v1585, %v1586
    %v1588 = vrot.slane %v1539, 1
    %v1589 = vsel %vm303, %v1586, %v1588
    %v1590 = vrot.slane %v1540, 1
    %v1591 = vrot.slane %v1541, 1
    %v1592 = vsel %vm303, %v1590, %v1591
    %v1593 = vrot.slane %v1542, 1
    %v1594 = vsel %vm303, %v1591, %v1593
    %v1595 = vrot.slane %v1543, 1
    %v1596 = vrot.slane %v1544, 1
    %v1597 = vsel %vm303, %v1595, %v1596
    %v1598 = vrot.slane %v1545, 1
    %v1599 = vsel %vm303, %v1596, %v1598
    %v1600 = vrot.slane %v1546, 1
    %v1601 = vrot.slane %v1547, 1
    %v1602 = vsel %vm303, %v1600, %v1601
    %v1603 = vrot.slane %v1548, 1
    %v1604 = vsel %vm303, %v1601, %v1603
    %v1605 = vrot.slane %v1549, 1
    %v1606 = vrot.slane %v1550, 1
    %v1607 = vsel %vm303, %v1605, %v1606
    %v1608 = vrot.slane %v1551, 1
    %v1609 = vsel %vm303, %v1606, %v1608
    %v1610 = vrot.slane %v1552, 1
    %v1611 = vrot.slane %v1553, 1
    %v1612 = vsel %vm303, %v1610, %v1611
    %v1613 = vrot.slane %v1554, 1
    %v1614 = vsel %vm303, %v1611, %v1613
    %v1615 = vrot.slane %v1555, 1
    %v1616 = vrot.slane %v1556, 1
    %v1617 = vsel %vm303, %v1615, %v1616
    %v1618 = vrot.slane %v1557, 1
    %v1619 = vsel %vm303, %v1616, %v1618
    %v1620 = vrot.slane %v1558, 1
    %v1621 = vrot.slane %v1559, 1
    %v1622 = vsel %vm303, %v1620, %v1621
    %v1623 = vrot.slane %v1560, 1
    %v1624 = vsel %vm303, %v1621, %v1623
    %v1641 = vadd.f32 %v1537, %v1587
    %v1642 = vadd.f32 %v1538, %v1589
    %v1643 = vadd.f32 %v1540, %v1592
    %v1644 = vadd.f32 %v1541, %v1594
    %v1645 = vadd.f32 %v1543, %v1597
    %v1646 = vadd.f32 %v1544, %v1599
    %v1647 = vadd.f32 %v1546, %v1602
    %v1648 = vadd.f32 %v1547, %v1604
    %v1649 = vadd.f32 %v1549, %v1607
    %v1650 = vadd.f32 %v1550, %v1609
    %v1651 = vadd.f32 %v1552, %v1612
    %v1652 = vadd.f32 %v1553, %v1614
    %v1653 = vadd.f32 %v1555, %v1617
    %v1654 = vadd.f32 %v1556, %v1619
    %v1655 = vadd.f32 %v1558, %v1622
    %v1656 = vadd.f32 %v1559, %v1624
    %v1657 = vrot.slane %v1537, 2
    %v1658 = vrot.slane %v1538, 2
    %v1659 = vsel %vm376, %v1657, %v1658
    %v1660 = vrot.slane %v1539, 2
    %v1661 = vsel %vm376, %v1658, %v1660
    %v1662 = vrot.slane %v1540, 2
    %v1663 = vrot.slane %v1541, 2
    %v1664 = vsel %vm376, %v1662, %v1663
    %v1665 = vrot.slane %v1542, 2
    %v1666 = vsel %vm376, %v1663, %v1665
    %v1667 = vrot.slane %v1543, 2
    %v1668 = vrot.slane %v1544, 2
    %v1669 = vsel %vm376, %v1667, %v1668
    %v1670 = vrot.slane %v1545, 2
    %v1671 = vsel %vm376, %v1668, %v1670
    %v1672 = vrot.slane %v1546, 2
    %v1673 = vrot.slane %v1547, 2
    %v1674 = vsel %vm376, %v1672, %v1673
    %v1675 = vrot.slane %v1548, 2
    %v1676 = vsel %vm376, %v1673, %v1675
    %v1677 = vrot.slane %v1549, 2
    %v1678 = vrot.slane %v1550, 2
    %v1679 = vsel %vm376, %v1677, %v1678
    %v1680 = vrot.slane %v1551, 2
    %v1681 = vsel %vm376, %v1678, %v1680
    %v1682 = vrot.slane %v1552, 2
    %v1683 = vrot.slane %v1553, 2
    %v1684 = vsel %vm376, %v1682, %v1683
    %v1685 = vrot.slane %v1554, 2
    %v1686 = vsel %vm376, %v1683, %v1685
    %v1687 = vrot.slane %v1555, 2
    %v1688 = vrot.slane %v1556, 2
    %v1689 = vsel %vm376, %v1687, %v1688
    %v1690 = vrot.slane %v1557, 2
    %v1691 = vsel %vm376, %v1688, %v1690
    %v1692 = vrot.slane %v1558, 2
    %v1693 = vrot.slane %v1559, 2
    %v1694 = vsel %vm376, %v1692, %v1693
    %v1695 = vrot.slane %v1560, 2
    %v1696 = vsel %vm376, %v1693, %v1695
    %v1713 = vadd.f32 %v1641, %v1659
    %v1714 = vadd.f32 %v1642, %v1661
    %v1715 = vadd.f32 %v1643, %v1664
    %v1716 = vadd.f32 %v1644, %v1666
    %v1717 = vadd.f32 %v1645, %v1669
    %v1718 = vadd.f32 %v1646, %v1671
    %v1719 = vadd.f32 %v1647, %v1674
    %v1720 = vadd.f32 %v1648, %v1676
    %v1721 = vadd.f32 %v1649, %v1679
    %v1722 = vadd.f32 %v1650, %v1681
    %v1723 = vadd.f32 %v1651, %v1684
    %v1724 = vadd.f32 %v1652, %v1686
    %v1725 = vadd.f32 %v1653, %v1689
    %v1726 = vadd.f32 %v1654, %v1691
    %v1727 = vadd.f32 %v1655, %v1694
    %v1728 = vadd.f32 %v1656, %v1696
    %v1729 = vmul.f32 %v1713, 0.11111111
    %v1730 = vmul.f32 %v1714, 0.11111111
    %v1731 = vmul.f32 %v1715, 0.11111111
    %v1732 = vmul.f32 %v1716, 0.11111111
    %v1733 = vmul.f32 %v1717, 0.11111111
    %v1734 = vmul.f32 %v1718, 0.11111111
    %v1735 = vmul.f32 %v1719, 0.11111111
    %v1736 = vmul.f32 %v1720, 0.11111111
    %v1737 = vmul.f32 %v1721, 0.11111111
    %v1738 = vmul.f32 %v1722, 0.11111111
    %v1739 = vmul.f32 %v1723, 0.11111111
    %v1740 = vmul.f32 %v1724, 0.11111111
    %v1741 = vmul.f32 %v1725, 0.11111111
    %v1742 = vmul.f32 %v1726, 0.11111111
    %v1743 = vmul.f32 %v1727, 0.11111111
    %v1744 = vmul.f32 %v1728, 0.11111111
    %v1745 = vmul.f32 %v849, %v849
    %v1746 = vmul.f32 %v850, %v850
    %v1747 = vmul.f32 %v851, %v851
    %v1748 = vmul.f32 %v852, %v852
    %v1749 = vmul.f32 %v853, %v853
    %v1750 = vmul.f32 %v854, %v854
    %v1751 = vmul.f32 %v855, %v855
    %v1752 = vmul.f32 %v856, %v856
    %v1753 = vmul.f32 %v857, %v857
    %v1754 = vmul.f32 %v858, %v858
    %v1755 = vmul.f32 %v859, %v859
    %v1756 = vmul.f32 %v860, %v860
    %v1757 = vmul.f32 %v861, %v861
    %v1758 = vmul.f32 %v862, %v862
    %v1759 = vmul.f32 %v863, %v863
    %v1760 = vmul.f32 %v864, %v864
    %v1761 = vsub.f32 %v1729, %v1745
    %v1762 = vsub.f32 %v1730, %v1746
    %v1763 = vsub.f32 %v1731, %v1747
    %v1764 = vsub.f32 %v1732, %v1748
    %v1765 = vsub.f32 %v1733, %v1749
    %v1766 = vsub.f32 %v1734, %v1750
    %v1767 = vsub.f32 %v1735, %v1751
    %v1768 = vsub.f32 %v1736, %v1752
    %v1769 = vsub.f32 %v1737, %v1753
    %v1770 = vsub.f32 %v1738, %v1754
    %v1771 = vsub.f32 %v1739, %v1755
    %v1772 = vsub.f32 %v1740, %v1756
    %v1773 = vsub.f32 %v1741, %v1757
    %v1774 = vsub.f32 %v1742, %v1758
    %v1775 = vsub.f32 %v1743, %v1759
    %v1776 = vsub.f32 %v1744, %v1760
    %v1777 = vmul.f32 %v15, %v39
    %v1778 = vmul.f32 %v16, %v40
    %v1779 = vmul.f32 %v17, %v41
    %v1780 = vmul.f32 %v18, %v42
    %v1781 = vmul.f32 %v19, %v43
    %v1782 = vmul.f32 %v20, %v44
    %v1783 = vmul.f32 %v21, %v45
    %v1784 = vmul.f32 %v22, %v46
    %v1785 = vmul.f32 %v23, %v47
    %v1786 = vmul.f32 %v24, %v48
    %v1787 = vmul.f32 %v25, %v49
    %v1788 = vmul.f32 %v26, %v50
    %v1789 = vmul.f32 %v27, %v51
    %v1790 = vmul.f32 %v28, %v52
    %v1791 = vmul.f32 %v29, %v53
    %v1792 = vmul.f32 %v30, %v54
    %v1793 = vmul.f32 %v31, %v55
    %v1794 = vmul.f32 %v32, %v56
    %v1795 = vmul.f32 %v33, %v57
    %v1796 = vmul.f32 %v34, %v58
    %v1797 = vmul.f32 %v35, %v59
    %v1798 = vmul.f32 %v36, %v60
    %v1799 = vmul.f32 %v37, %v61
    %v1800 = vmul.f32 %v38, %v62
    %1825 = vrot.lane.b32.xlu0 %v1777, 127
    %v1826 = vpop.permute.xlu0 %1825
    %1827 = vrot.lane.b32.xlu0 %v1778, 127
    %v1828 = vpop.permute.xlu0 %1827
    %1829 = vrot.lane.b32.xlu0 %v1779, 127
    %v1830 = vpop.permute.xlu0 %1829
    %1831 = vrot.lane.b32.xlu0 %v1780, 127
    %v1832 = vpop.permute.xlu0 %1831
    %1833 = vrot.lane.b32.xlu0 %v1781, 127
    %v1834 = vpop.permute.xlu0 %1833
    %1835 = vrot.lane.b32.xlu0 %v1782, 127
    %v1836 = vpop.permute.xlu0 %1835
    %1837 = vrot.lane.b32.xlu0 %v1783, 127
    %v1838 = vpop.permute.xlu0 %1837
    %1839 = vrot.lane.b32.xlu0 %v1784, 127
    %v1840 = vpop.permute.xlu0 %1839
    %1841 = vrot.lane.b32.xlu0 %v1785, 127
    %v1842 = vpop.permute.xlu0 %1841
    %1843 = vrot.lane.b32.xlu0 %v1786, 127
    %v1844 = vpop.permute.xlu0 %1843
    %1845 = vrot.lane.b32.xlu0 %v1787, 127
    %v1846 = vpop.permute.xlu0 %1845
    %1847 = vrot.lane.b32.xlu0 %v1788, 127
    %v1848 = vpop.permute.xlu0 %1847
    %1849 = vrot.lane.b32.xlu0 %v1789, 127
    %v1850 = vpop.permute.xlu0 %1849
    %1851 = vrot.lane.b32.xlu0 %v1790, 127
    %v1852 = vpop.permute.xlu0 %1851
    %1853 = vrot.lane.b32.xlu0 %v1791, 127
    %v1854 = vpop.permute.xlu0 %1853
    %1855 = vrot.lane.b32.xlu0 %v1792, 127
    %v1856 = vpop.permute.xlu0 %1855
    %1857 = vrot.lane.b32.xlu0 %v1793, 127
    %v1858 = vpop.permute.xlu0 %1857
    %1859 = vrot.lane.b32.xlu0 %v1794, 127
    %v1860 = vpop.permute.xlu0 %1859
    %1861 = vrot.lane.b32.xlu0 %v1795, 127
    %v1862 = vpop.permute.xlu0 %1861
    %1863 = vrot.lane.b32.xlu0 %v1796, 127
    %v1864 = vpop.permute.xlu0 %1863
    %1865 = vrot.lane.b32.xlu0 %v1797, 127
    %v1866 = vpop.permute.xlu0 %1865
    %1867 = vrot.lane.b32.xlu0 %v1798, 127
    %v1868 = vpop.permute.xlu0 %1867
    %1869 = vrot.lane.b32.xlu0 %v1799, 127
    %v1870 = vpop.permute.xlu0 %1869
    %1871 = vrot.lane.b32.xlu0 %v1800, 127
    %v1872 = vpop.permute.xlu0 %1871
    %v1897 = vadd.f32 %v1777, %v1826
    %v1898 = vadd.f32 %v1778, %v1828
    %v1899 = vadd.f32 %v1779, %v1830
    %v1900 = vadd.f32 %v1780, %v1832
    %v1901 = vadd.f32 %v1781, %v1834
    %v1902 = vadd.f32 %v1782, %v1836
    %v1903 = vadd.f32 %v1783, %v1838
    %v1904 = vadd.f32 %v1784, %v1840
    %v1905 = vadd.f32 %v1785, %v1842
    %v1906 = vadd.f32 %v1786, %v1844
    %v1907 = vadd.f32 %v1787, %v1846
    %v1908 = vadd.f32 %v1788, %v1848
    %v1909 = vadd.f32 %v1789, %v1850
    %v1910 = vadd.f32 %v1790, %v1852
    %v1911 = vadd.f32 %v1791, %v1854
    %v1912 = vadd.f32 %v1792, %v1856
    %v1913 = vadd.f32 %v1793, %v1858
    %v1914 = vadd.f32 %v1794, %v1860
    %v1915 = vadd.f32 %v1795, %v1862
    %v1916 = vadd.f32 %v1796, %v1864
    %v1917 = vadd.f32 %v1797, %v1866
    %v1918 = vadd.f32 %v1798, %v1868
    %v1919 = vadd.f32 %v1799, %v1870
    %v1920 = vadd.f32 %v1800, %v1872
    %1921 = vrot.lane.b32.xlu0 %v1777, 126
    %v1922 = vpop.permute.xlu0 %1921
    %1923 = vrot.lane.b32.xlu0 %v1778, 126
    %v1924 = vpop.permute.xlu0 %1923
    %1925 = vrot.lane.b32.xlu0 %v1779, 126
    %v1926 = vpop.permute.xlu0 %1925
    %1927 = vrot.lane.b32.xlu0 %v1780, 126
    %v1928 = vpop.permute.xlu0 %1927
    %1929 = vrot.lane.b32.xlu0 %v1781, 126
    %v1930 = vpop.permute.xlu0 %1929
    %1931 = vrot.lane.b32.xlu0 %v1782, 126
    %v1932 = vpop.permute.xlu0 %1931
    %1933 = vrot.lane.b32.xlu0 %v1783, 126
    %v1934 = vpop.permute.xlu0 %1933
    %1935 = vrot.lane.b32.xlu0 %v1784, 126
    %v1936 = vpop.permute.xlu0 %1935
    %1937 = vrot.lane.b32.xlu0 %v1785, 126
    %v1938 = vpop.permute.xlu0 %1937
    %1939 = vrot.lane.b32.xlu0 %v1786, 126
    %v1940 = vpop.permute.xlu0 %1939
    %1941 = vrot.lane.b32.xlu0 %v1787, 126
    %v1942 = vpop.permute.xlu0 %1941
    %1943 = vrot.lane.b32.xlu0 %v1788, 126
    %v1944 = vpop.permute.xlu0 %1943
    %1945 = vrot.lane.b32.xlu0 %v1789, 126
    %v1946 = vpop.permute.xlu0 %1945
    %1947 = vrot.lane.b32.xlu0 %v1790, 126
    %v1948 = vpop.permute.xlu0 %1947
    %1949 = vrot.lane.b32.xlu0 %v1791, 126
    %v1950 = vpop.permute.xlu0 %1949
    %1951 = vrot.lane.b32.xlu0 %v1792, 126
    %v1952 = vpop.permute.xlu0 %1951
    %1953 = vrot.lane.b32.xlu0 %v1793, 126
    %v1954 = vpop.permute.xlu0 %1953
    %1955 = vrot.lane.b32.xlu0 %v1794, 126
    %v1956 = vpop.permute.xlu0 %1955
    %1957 = vrot.lane.b32.xlu0 %v1795, 126
    %v1958 = vpop.permute.xlu0 %1957
    %1959 = vrot.lane.b32.xlu0 %v1796, 126
    %v1960 = vpop.permute.xlu0 %1959
    %1961 = vrot.lane.b32.xlu0 %v1797, 126
    %v1962 = vpop.permute.xlu0 %1961
    %1963 = vrot.lane.b32.xlu0 %v1798, 126
    %v1964 = vpop.permute.xlu0 %1963
    %1965 = vrot.lane.b32.xlu0 %v1799, 126
    %v1966 = vpop.permute.xlu0 %1965
    %1967 = vrot.lane.b32.xlu0 %v1800, 126
    %v1968 = vpop.permute.xlu0 %1967
    %v1993 = vadd.f32 %v1897, %v1922
    %v1994 = vadd.f32 %v1898, %v1924
    %v1995 = vadd.f32 %v1899, %v1926
    %v1996 = vadd.f32 %v1900, %v1928
    %v1997 = vadd.f32 %v1901, %v1930
    %v1998 = vadd.f32 %v1902, %v1932
    %v1999 = vadd.f32 %v1903, %v1934
    %v2000 = vadd.f32 %v1904, %v1936
    %v2001 = vadd.f32 %v1905, %v1938
    %v2002 = vadd.f32 %v1906, %v1940
    %v2003 = vadd.f32 %v1907, %v1942
    %v2004 = vadd.f32 %v1908, %v1944
    %v2005 = vadd.f32 %v1909, %v1946
    %v2006 = vadd.f32 %v1910, %v1948
    %v2007 = vadd.f32 %v1911, %v1950
    %v2008 = vadd.f32 %v1912, %v1952
    %v2009 = vadd.f32 %v1913, %v1954
    %v2010 = vadd.f32 %v1914, %v1956
    %v2011 = vadd.f32 %v1915, %v1958
    %v2012 = vadd.f32 %v1916, %v1960
    %v2013 = vadd.f32 %v1917, %v1962
    %v2014 = vadd.f32 %v1918, %v1964
    %v2015 = vadd.f32 %v1919, %v1966
    %v2016 = vadd.f32 %v1920, %v1968
    %v2041 = vrot.slane %v1993, 1
    %v2042 = vrot.slane %v1994, 1
    %v2043 = vsel %vm303, %v2041, %v2042
    %v2044 = vrot.slane %v1995, 1
    %v2045 = vsel %vm303, %v2042, %v2044
    %v2046 = vrot.slane %v1996, 1
    %v2047 = vrot.slane %v1997, 1
    %v2048 = vsel %vm303, %v2046, %v2047
    %v2049 = vrot.slane %v1998, 1
    %v2050 = vsel %vm303, %v2047, %v2049
    %v2051 = vrot.slane %v1999, 1
    %v2052 = vrot.slane %v2000, 1
    %v2053 = vsel %vm303, %v2051, %v2052
    %v2054 = vrot.slane %v2001, 1
    %v2055 = vsel %vm303, %v2052, %v2054
    %v2056 = vrot.slane %v2002, 1
    %v2057 = vrot.slane %v2003, 1
    %v2058 = vsel %vm303, %v2056, %v2057
    %v2059 = vrot.slane %v2004, 1
    %v2060 = vsel %vm303, %v2057, %v2059
    %v2061 = vrot.slane %v2005, 1
    %v2062 = vrot.slane %v2006, 1
    %v2063 = vsel %vm303, %v2061, %v2062
    %v2064 = vrot.slane %v2007, 1
    %v2065 = vsel %vm303, %v2062, %v2064
    %v2066 = vrot.slane %v2008, 1
    %v2067 = vrot.slane %v2009, 1
    %v2068 = vsel %vm303, %v2066, %v2067
    %v2069 = vrot.slane %v2010, 1
    %v2070 = vsel %vm303, %v2067, %v2069
    %v2071 = vrot.slane %v2011, 1
    %v2072 = vrot.slane %v2012, 1
    %v2073 = vsel %vm303, %v2071, %v2072
    %v2074 = vrot.slane %v2013, 1
    %v2075 = vsel %vm303, %v2072, %v2074
    %v2076 = vrot.slane %v2014, 1
    %v2077 = vrot.slane %v2015, 1
    %v2078 = vsel %vm303, %v2076, %v2077
    %v2079 = vrot.slane %v2016, 1
    %v2080 = vsel %vm303, %v2077, %v2079
    %v2097 = vadd.f32 %v1993, %v2043
    %v2098 = vadd.f32 %v1994, %v2045
    %v2099 = vadd.f32 %v1996, %v2048
    %v2100 = vadd.f32 %v1997, %v2050
    %v2101 = vadd.f32 %v1999, %v2053
    %v2102 = vadd.f32 %v2000, %v2055
    %v2103 = vadd.f32 %v2002, %v2058
    %v2104 = vadd.f32 %v2003, %v2060
    %v2105 = vadd.f32 %v2005, %v2063
    %v2106 = vadd.f32 %v2006, %v2065
    %v2107 = vadd.f32 %v2008, %v2068
    %v2108 = vadd.f32 %v2009, %v2070
    %v2109 = vadd.f32 %v2011, %v2073
    %v2110 = vadd.f32 %v2012, %v2075
    %v2111 = vadd.f32 %v2014, %v2078
    %v2112 = vadd.f32 %v2015, %v2080
    %v2113 = vrot.slane %v1993, 2
    %v2114 = vrot.slane %v1994, 2
    %v2115 = vsel %vm376, %v2113, %v2114
    %v2116 = vrot.slane %v1995, 2
    %v2117 = vsel %vm376, %v2114, %v2116
    %v2118 = vrot.slane %v1996, 2
    %v2119 = vrot.slane %v1997, 2
    %v2120 = vsel %vm376, %v2118, %v2119
    %v2121 = vrot.slane %v1998, 2
    %v2122 = vsel %vm376, %v2119, %v2121
    %v2123 = vrot.slane %v1999, 2
    %v2124 = vrot.slane %v2000, 2
    %v2125 = vsel %vm376, %v2123, %v2124
    %v2126 = vrot.slane %v2001, 2
    %v2127 = vsel %vm376, %v2124, %v2126
    %v2128 = vrot.slane %v2002, 2
    %v2129 = vrot.slane %v2003, 2
    %v2130 = vsel %vm376, %v2128, %v2129
    %v2131 = vrot.slane %v2004, 2
    %v2132 = vsel %vm376, %v2129, %v2131
    %v2133 = vrot.slane %v2005, 2
    %v2134 = vrot.slane %v2006, 2
    %v2135 = vsel %vm376, %v2133, %v2134
    %v2136 = vrot.slane %v2007, 2
    %v2137 = vsel %vm376, %v2134, %v2136
    %v2138 = vrot.slane %v2008, 2
    %v2139 = vrot.slane %v2009, 2
    %v2140 = vsel %vm376, %v2138, %v2139
    %v2141 = vrot.slane %v2010, 2
    %v2142 = vsel %vm376, %v2139, %v2141
    %v2143 = vrot.slane %v2011, 2
    %v2144 = vrot.slane %v2012, 2
    %v2145 = vsel %vm376, %v2143, %v2144
    %v2146 = vrot.slane %v2013, 2
    %v2147 = vsel %vm376, %v2144, %v2146
    %v2148 = vrot.slane %v2014, 2
    %v2149 = vrot.slane %v2015, 2
    %v2150 = vsel %vm376, %v2148, %v2149
    %v2151 = vrot.slane %v2016, 2
    %v2152 = vsel %vm376, %v2149, %v2151
    %v2169 = vadd.f32 %v2097, %v2115
    %v2170 = vadd.f32 %v2098, %v2117
    %v2171 = vadd.f32 %v2099, %v2120
    %v2172 = vadd.f32 %v2100, %v2122
    %v2173 = vadd.f32 %v2101, %v2125
    %v2174 = vadd.f32 %v2102, %v2127
    %v2175 = vadd.f32 %v2103, %v2130
    %v2176 = vadd.f32 %v2104, %v2132
    %v2177 = vadd.f32 %v2105, %v2135
    %v2178 = vadd.f32 %v2106, %v2137
    %v2179 = vadd.f32 %v2107, %v2140
    %v2180 = vadd.f32 %v2108, %v2142
    %v2181 = vadd.f32 %v2109, %v2145
    %v2182 = vadd.f32 %v2110, %v2147
    %v2183 = vadd.f32 %v2111, %v2150
    %v2184 = vadd.f32 %v2112, %v2152
    %v2185 = vmul.f32 %v2169, 0.11111111
    %v2186 = vmul.f32 %v2170, 0.11111111
    %v2187 = vmul.f32 %v2171, 0.11111111
    %v2188 = vmul.f32 %v2172, 0.11111111
    %v2189 = vmul.f32 %v2173, 0.11111111
    %v2190 = vmul.f32 %v2174, 0.11111111
    %v2191 = vmul.f32 %v2175, 0.11111111
    %v2192 = vmul.f32 %v2176, 0.11111111
    %v2193 = vmul.f32 %v2177, 0.11111111
    %v2194 = vmul.f32 %v2178, 0.11111111
    %v2195 = vmul.f32 %v2179, 0.11111111
    %v2196 = vmul.f32 %v2180, 0.11111111
    %v2197 = vmul.f32 %v2181, 0.11111111
    %v2198 = vmul.f32 %v2182, 0.11111111
    %v2199 = vmul.f32 %v2183, 0.11111111
    %v2200 = vmul.f32 %v2184, 0.11111111
    %v2201 = vmul.f32 %v449, %v849
    %v2202 = vmul.f32 %v450, %v850
    %v2203 = vmul.f32 %v451, %v851
    %v2204 = vmul.f32 %v452, %v852
    %v2205 = vmul.f32 %v453, %v853
    %v2206 = vmul.f32 %v454, %v854
    %v2207 = vmul.f32 %v455, %v855
    %v2208 = vmul.f32 %v456, %v856
    %v2209 = vmul.f32 %v457, %v857
    %v2210 = vmul.f32 %v458, %v858
    %v2211 = vmul.f32 %v459, %v859
    %v2212 = vmul.f32 %v460, %v860
    %v2213 = vmul.f32 %v461, %v861
    %v2214 = vmul.f32 %v462, %v862
    %v2215 = vmul.f32 %v463, %v863
    %v2216 = vmul.f32 %v464, %v864
    %v2217 = vsub.f32 %v2185, %v2201
    %v2218 = vsub.f32 %v2186, %v2202
    %v2219 = vsub.f32 %v2187, %v2203
    %v2220 = vsub.f32 %v2188, %v2204
    %v2221 = vsub.f32 %v2189, %v2205
    %v2222 = vsub.f32 %v2190, %v2206
    %v2223 = vsub.f32 %v2191, %v2207
    %v2224 = vsub.f32 %v2192, %v2208
    %v2225 = vsub.f32 %v2193, %v2209
    %v2226 = vsub.f32 %v2194, %v2210
    %v2227 = vsub.f32 %v2195, %v2211
    %v2228 = vsub.f32 %v2196, %v2212
    %v2229 = vsub.f32 %v2197, %v2213
    %v2230 = vsub.f32 %v2198, %v2214
    %v2231 = vsub.f32 %v2199, %v2215
    %v2232 = vsub.f32 %v2200, %v2216
    %v2233 = vmul.f32 %v449, 2.0
    %v2234 = vmul.f32 %v450, 2.0
    %v2235 = vmul.f32 %v451, 2.0
    %v2236 = vmul.f32 %v452, 2.0
    %v2237 = vmul.f32 %v453, 2.0
    %v2238 = vmul.f32 %v454, 2.0
    %v2239 = vmul.f32 %v455, 2.0
    %v2240 = vmul.f32 %v456, 2.0
    %v2241 = vmul.f32 %v457, 2.0
    %v2242 = vmul.f32 %v458, 2.0
    %v2243 = vmul.f32 %v459, 2.0
    %v2244 = vmul.f32 %v460, 2.0
    %v2245 = vmul.f32 %v461, 2.0
    %v2246 = vmul.f32 %v462, 2.0
    %v2247 = vmul.f32 %v463, 2.0
    %v2248 = vmul.f32 %v464, 2.0
    %v2249 = vmul.f32 %v2233, %v849
    %v2250 = vmul.f32 %v2234, %v850
    %v2251 = vmul.f32 %v2235, %v851
    %v2252 = vmul.f32 %v2236, %v852
    %v2253 = vmul.f32 %v2237, %v853
    %v2254 = vmul.f32 %v2238, %v854
    %v2255 = vmul.f32 %v2239, %v855
    %v2256 = vmul.f32 %v2240, %v856
    %v2257 = vmul.f32 %v2241, %v857
    %v2258 = vmul.f32 %v2242, %v858
    %v2259 = vmul.f32 %v2243, %v859
    %v2260 = vmul.f32 %v2244, %v860
    %v2261 = vmul.f32 %v2245, %v861
    %v2262 = vmul.f32 %v2246, %v862
    %v2263 = vmul.f32 %v2247, %v863
    %v2264 = vmul.f32 %v2248, %v864
    %v2265 = vadd.f32 %v2249, 0.0001
    %v2266 = vadd.f32 %v2250, 0.0001
    %v2267 = vadd.f32 %v2251, 0.0001
    %v2268 = vadd.f32 %v2252, 0.0001
    %v2269 = vadd.f32 %v2253, 0.0001
    %v2270 = vadd.f32 %v2254, 0.0001
    %v2271 = vadd.f32 %v2255, 0.0001
    %v2272 = vadd.f32 %v2256, 0.0001
    %v2273 = vadd.f32 %v2257, 0.0001
    %v2274 = vadd.f32 %v2258, 0.0001
    %v2275 = vadd.f32 %v2259, 0.0001
    %v2276 = vadd.f32 %v2260, 0.0001
    %v2277 = vadd.f32 %v2261, 0.0001
    %v2278 = vadd.f32 %v2262, 0.0001
    %v2279 = vadd.f32 %v2263, 0.0001
    %v2280 = vadd.f32 %v2264, 0.0001
    %v2281 = vmul.f32 %v2217, 2.0
    %v2282 = vmul.f32 %v2218, 2.0
    %v2283 = vmul.f32 %v2219, 2.0
    %v2284 = vmul.f32 %v2220, 2.0
    %v2285 = vmul.f32 %v2221, 2.0
    %v2286 = vmul.f32 %v2222, 2.0
    %v2287 = vmul.f32 %v2223, 2.0
    %v2288 = vmul.f32 %v2224, 2.0
    %v2289 = vmul.f32 %v2225, 2.0
    %v2290 = vmul.f32 %v2226, 2.0
    %v2291 = vmul.f32 %v2227, 2.0
    %v2292 = vmul.f32 %v2228, 2.0
    %v2293 = vmul.f32 %v2229, 2.0
    %v2294 = vmul.f32 %v2230, 2.0
    %v2295 = vmul.f32 %v2231, 2.0
    %v2296 = vmul.f32 %v2232, 2.0
    %v2297 = vadd.f32 %v2281, 0.0009
    %v2298 = vadd.f32 %v2282, 0.0009
    %v2299 = vadd.f32 %v2283, 0.0009
    %v2300 = vadd.f32 %v2284, 0.0009
    %v2301 = vadd.f32 %v2285, 0.0009
    %v2302 = vadd.f32 %v2286, 0.0009
    %v2303 = vadd.f32 %v2287, 0.0009
    %v2304 = vadd.f32 %v2288, 0.0009
    %v2305 = vadd.f32 %v2289, 0.0009
    %v2306 = vadd.f32 %v2290, 0.0009
    %v2307 = vadd.f32 %v2291, 0.0009
    %v2308 = vadd.f32 %v2292, 0.0009
    %v2309 = vadd.f32 %v2293, 0.0009
    %v2310 = vadd.f32 %v2294, 0.0009
    %v2311 = vadd.f32 %v2295, 0.0009
    %v2312 = vadd.f32 %v2296, 0.0009
    %v2313 = vmul.f32 %v2265, %v2297
    %v2314 = vmul.f32 %v2266, %v2298
    %v2315 = vmul.f32 %v2267, %v2299
    %v2316 = vmul.f32 %v2268, %v2300
    %v2317 = vmul.f32 %v2269, %v2301
    %v2318 = vmul.f32 %v2270, %v2302
    %v2319 = vmul.f32 %v2271, %v2303
    %v2320 = vmul.f32 %v2272, %v2304
    %v2321 = vmul.f32 %v2273, %v2305
    %v2322 = vmul.f32 %v2274, %v2306
    %v2323 = vmul.f32 %v2275, %v2307
    %v2324 = vmul.f32 %v2276, %v2308
    %v2325 = vmul.f32 %v2277, %v2309
    %v2326 = vmul.f32 %v2278, %v2310
    %v2327 = vmul.f32 %v2279, %v2311
    %v2328 = vmul.f32 %v2280, %v2312
    %v2329 = vadd.f32 %v1289, %v1745
    %v2330 = vadd.f32 %v1290, %v1746
    %v2331 = vadd.f32 %v1291, %v1747
    %v2332 = vadd.f32 %v1292, %v1748
    %v2333 = vadd.f32 %v1293, %v1749
    %v2334 = vadd.f32 %v1294, %v1750
    %v2335 = vadd.f32 %v1295, %v1751
    %v2336 = vadd.f32 %v1296, %v1752
    %v2337 = vadd.f32 %v1297, %v1753
    %v2338 = vadd.f32 %v1298, %v1754
    %v2339 = vadd.f32 %v1299, %v1755
    %v2340 = vadd.f32 %v1300, %v1756
    %v2341 = vadd.f32 %v1301, %v1757
    %v2342 = vadd.f32 %v1302, %v1758
    %v2343 = vadd.f32 %v1303, %v1759
    %v2344 = vadd.f32 %v1304, %v1760
    %v2345 = vadd.f32 %v2329, 0.0001
    %v2346 = vadd.f32 %v2330, 0.0001
    %v2347 = vadd.f32 %v2331, 0.0001
    %v2348 = vadd.f32 %v2332, 0.0001
    %v2349 = vadd.f32 %v2333, 0.0001
    %v2350 = vadd.f32 %v2334, 0.0001
    %v2351 = vadd.f32 %v2335, 0.0001
    %v2352 = vadd.f32 %v2336, 0.0001
    %v2353 = vadd.f32 %v2337, 0.0001
    %v2354 = vadd.f32 %v2338, 0.0001
    %v2355 = vadd.f32 %v2339, 0.0001
    %v2356 = vadd.f32 %v2340, 0.0001
    %v2357 = vadd.f32 %v2341, 0.0001
    %v2358 = vadd.f32 %v2342, 0.0001
    %v2359 = vadd.f32 %v2343, 0.0001
    %v2360 = vadd.f32 %v2344, 0.0001
    %v2361 = vadd.f32 %v1305, %v1761
    %v2362 = vadd.f32 %v1306, %v1762
    %v2363 = vadd.f32 %v1307, %v1763
    %v2364 = vadd.f32 %v1308, %v1764
    %v2365 = vadd.f32 %v1309, %v1765
    %v2366 = vadd.f32 %v1310, %v1766
    %v2367 = vadd.f32 %v1311, %v1767
    %v2368 = vadd.f32 %v1312, %v1768
    %v2369 = vadd.f32 %v1313, %v1769
    %v2370 = vadd.f32 %v1314, %v1770
    %v2371 = vadd.f32 %v1315, %v1771
    %v2372 = vadd.f32 %v1316, %v1772
    %v2373 = vadd.f32 %v1317, %v1773
    %v2374 = vadd.f32 %v1318, %v1774
    %v2375 = vadd.f32 %v1319, %v1775
    %v2376 = vadd.f32 %v1320, %v1776
    %v2377 = vadd.f32 %v2361, 0.0009
    %v2378 = vadd.f32 %v2362, 0.0009
    %v2379 = vadd.f32 %v2363, 0.0009
    %v2380 = vadd.f32 %v2364, 0.0009
    %v2381 = vadd.f32 %v2365, 0.0009
    %v2382 = vadd.f32 %v2366, 0.0009
    %v2383 = vadd.f32 %v2367, 0.0009
    %v2384 = vadd.f32 %v2368, 0.0009
    %v2385 = vadd.f32 %v2369, 0.0009
    %v2386 = vadd.f32 %v2370, 0.0009
    %v2387 = vadd.f32 %v2371, 0.0009
    %v2388 = vadd.f32 %v2372, 0.0009
    %v2389 = vadd.f32 %v2373, 0.0009
    %v2390 = vadd.f32 %v2374, 0.0009
    %v2391 = vadd.f32 %v2375, 0.0009
    %v2392 = vadd.f32 %v2376, 0.0009
    %v2393 = vmul.f32 %v2345, %v2377
    %v2394 = vmul.f32 %v2346, %v2378
    %v2395 = vmul.f32 %v2347, %v2379
    %v2396 = vmul.f32 %v2348, %v2380
    %v2397 = vmul.f32 %v2349, %v2381
    %v2398 = vmul.f32 %v2350, %v2382
    %v2399 = vmul.f32 %v2351, %v2383
    %v2400 = vmul.f32 %v2352, %v2384
    %v2401 = vmul.f32 %v2353, %v2385
    %v2402 = vmul.f32 %v2354, %v2386
    %v2403 = vmul.f32 %v2355, %v2387
    %v2404 = vmul.f32 %v2356, %v2388
    %v2405 = vmul.f32 %v2357, %v2389
    %v2406 = vmul.f32 %v2358, %v2390
    %v2407 = vmul.f32 %v2359, %v2391
    %v2408 = vmul.f32 %v2360, %v2392
    %v2409 = vrcp.pop %v2393
    %v2410 = vmul.f32 %v2313, %v2409
    %v2411 = vrcp.pop %v2394
    %v2412 = vmul.f32 %v2314, %v2411
    %v2413 = vrcp.pop %v2395
    %v2414 = vmul.f32 %v2315, %v2413
    %v2415 = vrcp.pop %v2396
    %v2416 = vmul.f32 %v2316, %v2415
    %v2417 = vrcp.pop %v2397
    %v2418 = vmul.f32 %v2317, %v2417
    %v2419 = vrcp.pop %v2398
    %v2420 = vmul.f32 %v2318, %v2419
    %v2421 = vrcp.pop %v2399
    %v2422 = vmul.f32 %v2319, %v2421
    %v2423 = vrcp.pop %v2400
    %v2424 = vmul.f32 %v2320, %v2423
    %v2425 = vrcp.pop %v2401
    %v2426 = vmul.f32 %v2321, %v2425
    %v2427 = vrcp.pop %v2402
    %v2428 = vmul.f32 %v2322, %v2427
    %v2429 = vrcp.pop %v2403
    %v2430 = vmul.f32 %v2323, %v2429
    %v2431 = vrcp.pop %v2404
    %v2432 = vmul.f32 %v2324, %v2431
    %v2433 = vrcp.pop %v2405
    %v2434 = vmul.f32 %v2325, %v2433
    %v2435 = vrcp.pop %v2406
    %v2436 = vmul.f32 %v2326, %v2435
    %v2437 = vrcp.pop %v2407
    %v2438 = vmul.f32 %v2327, %v2437
    %v2439 = vrcp.pop %v2408
    %v2440 = vmul.f32 %v2328, %v2439
    %v2441 = vsub.f32 1.0, %v2410
    %v2442 = vsub.f32 1.0, %v2412
    %v2443 = vsub.f32 1.0, %v2414
    %v2444 = vsub.f32 1.0, %v2416
    %v2445 = vsub.f32 1.0, %v2418
    %v2446 = vsub.f32 1.0, %v2420
    %v2447 = vsub.f32 1.0, %v2422
    %v2448 = vsub.f32 1.0, %v2424
    %v2449 = vsub.f32 1.0, %v2426
    %v2450 = vsub.f32 1.0, %v2428
    %v2451 = vsub.f32 1.0, %v2430
    %v2452 = vsub.f32 1.0, %v2432
    %v2453 = vsub.f32 1.0, %v2434
    %v2454 = vsub.f32 1.0, %v2436
    %v2455 = vsub.f32 1.0, %v2438
    %v2456 = vsub.f32 1.0, %v2440
    %v2457 = vmul.f32 %v2441, 0.5
    %v2458 = vmul.f32 %v2442, 0.5
    %v2459 = vmul.f32 %v2443, 0.5
    %v2460 = vmul.f32 %v2444, 0.5
    %v2461 = vmul.f32 %v2445, 0.5
    %v2462 = vmul.f32 %v2446, 0.5
    %v2463 = vmul.f32 %v2447, 0.5
    %v2464 = vmul.f32 %v2448, 0.5
    %v2465 = vmul.f32 %v2449, 0.5
    %v2466 = vmul.f32 %v2450, 0.5
    %v2467 = vmul.f32 %v2451, 0.5
    %v2468 = vmul.f32 %v2452, 0.5
    %v2469 = vmul.f32 %v2453, 0.5
    %v2470 = vmul.f32 %v2454, 0.5
    %v2471 = vmul.f32 %v2455, 0.5
    %v2472 = vmul.f32 %v2456, 0.5
    %v2473 = vmax.f32 %v2457, 0.0
    %v2474 = vmax.f32 %v2458, 0.0
    %v2475 = vmax.f32 %v2459, 0.0
    %v2476 = vmax.f32 %v2460, 0.0
    %v2477 = vmax.f32 %v2461, 0.0
    %v2478 = vmax.f32 %v2462, 0.0
    %v2479 = vmax.f32 %v2463, 0.0
    %v2480 = vmax.f32 %v2464, 0.0
    %v2481 = vmax.f32 %v2465, 0.0
    %v2482 = vmax.f32 %v2466, 0.0
    %v2483 = vmax.f32 %v2467, 0.0
    %v2484 = vmax.f32 %v2468, 0.0
    %v2485 = vmax.f32 %v2469, 0.0
    %v2486 = vmax.f32 %v2470, 0.0
    %v2487 = vmax.f32 %v2471, 0.0
    %v2488 = vmax.f32 %v2472, 0.0
    %v2489 = vmin.f32 %v2473, 1.0
    %v2490 = vmin.f32 %v2474, 1.0
    %v2491 = vmin.f32 %v2475, 1.0
    %v2492 = vmin.f32 %v2476, 1.0
    %v2493 = vmin.f32 %v2477, 1.0
    %v2494 = vmin.f32 %v2478, 1.0
    %v2495 = vmin.f32 %v2479, 1.0
    %v2496 = vmin.f32 %v2480, 1.0
    %v2497 = vmin.f32 %v2481, 1.0
    %v2498 = vmin.f32 %v2482, 1.0
    %v2499 = vmin.f32 %v2483, 1.0
    %v2500 = vmin.f32 %v2484, 1.0
    %v2501 = vmin.f32 %v2485, 1.0
    %v2502 = vmin.f32 %v2486, 1.0
    %v2503 = vmin.f32 %v2487, 1.0
    %v2504 = vmin.f32 %v2488, 1.0
    %v2505 = vsub.f32 %v15, %v39
    %v2506 = vsub.f32 %v16, %v40
    %v2507 = vsub.f32 %v17, %v41
    %v2508 = vsub.f32 %v18, %v42
    %v2509 = vsub.f32 %v19, %v43
    %v2510 = vsub.f32 %v20, %v44
    %v2511 = vsub.f32 %v21, %v45
    %v2512 = vsub.f32 %v22, %v46
    %v2513 = vsub.f32 %v23, %v47
    %v2514 = vsub.f32 %v24, %v48
    %v2515 = vsub.f32 %v25, %v49
    %v2516 = vsub.f32 %v26, %v50
    %v2517 = vsub.f32 %v27, %v51
    %v2518 = vsub.f32 %v28, %v52
    %v2519 = vsub.f32 %v29, %v53
    %v2520 = vsub.f32 %v30, %v54
    %v2521 = vsub.f32 %v31, %v55
    %v2522 = vsub.f32 %v32, %v56
    %v2523 = vsub.f32 %v33, %v57
    %v2524 = vsub.f32 %v34, %v58
    %v2525 = vsub.f32 %v35, %v59
    %v2526 = vsub.f32 %v36, %v60
    %v2527 = vsub.f32 %v37, %v61
    %v2528 = vsub.f32 %v38, %v62
    %v2529 = vand.u32 2147483647, %v2505
    %v2530 = vand.u32 2147483647, %v2506
    %v2531 = vand.u32 2147483647, %v2507
    %v2532 = vand.u32 2147483647, %v2508
    %v2533 = vand.u32 2147483647, %v2509
    %v2534 = vand.u32 2147483647, %v2510
    %v2535 = vand.u32 2147483647, %v2511
    %v2536 = vand.u32 2147483647, %v2512
    %v2537 = vand.u32 2147483647, %v2513
    %v2538 = vand.u32 2147483647, %v2514
    %v2539 = vand.u32 2147483647, %v2515
    %v2540 = vand.u32 2147483647, %v2516
    %v2541 = vand.u32 2147483647, %v2517
    %v2542 = vand.u32 2147483647, %v2518
    %v2543 = vand.u32 2147483647, %v2519
    %v2544 = vand.u32 2147483647, %v2520
    %v2545 = vand.u32 2147483647, %v2521
    %v2546 = vand.u32 2147483647, %v2522
    %v2547 = vand.u32 2147483647, %v2523
    %v2548 = vand.u32 2147483647, %v2524
    %v2549 = vand.u32 2147483647, %v2525
    %v2550 = vand.u32 2147483647, %v2526
    %v2551 = vand.u32 2147483647, %v2527
    %v2552 = vand.u32 2147483647, %v2528
    %vm2553 = vcmask 138249
    %v2554 = vsel %vm2553, %v2529, 0.0
    %v2555 = vsel %vm2553, %v2532, 0.0
    %v2556 = vadd.f32 %v2554, %v2555
    %v2557 = vsel %vm2553, %v2535, 0.0
    %v2558 = vadd.f32 %v2556, %v2557
    %v2559 = vsel %vm2553, %v2538, 0.0
    %v2560 = vadd.f32 %v2558, %v2559
    %v2561 = vsel %vm2553, %v2541, 0.0
    %v2562 = vadd.f32 %v2560, %v2561
    %v2563 = vsel %vm2553, %v2544, 0.0
    %v2564 = vadd.f32 %v2562, %v2563
    %v2565 = vsel %vm2553, %v2547, 0.0
    %v2566 = vadd.f32 %v2564, %v2565
    %v2567 = vsel %vm2553, %v2550, 0.0
    %v2568 = vadd.f32 %v2566, %v2567
    %vm2569 = vcmask 138248
    %v2570 = vsel %vm2569, %v2530, 0.0
    %v2571 = vsel %vm2569, %v2533, 0.0
    %v2572 = vadd.f32 %v2570, %v2571
    %v2573 = vsel %vm2569, %v2536, 0.0
    %v2574 = vadd.f32 %v2572, %v2573
    %v2575 = vsel %vm2569, %v2539, 0.0
    %v2576 = vadd.f32 %v2574, %v2575
    %v2577 = vsel %vm2569, %v2542, 0.0
    %v2578 = vadd.f32 %v2576, %v2577
    %v2579 = vsel %vm2569, %v2545, 0.0
    %v2580 = vadd.f32 %v2578, %v2579
    %v2581 = vsel %vm2569, %v2548, 0.0
    %v2582 = vadd.f32 %v2580, %v2581
    %v2583 = vsel %vm2569, %v2551, 0.0
    %v2584 = vadd.f32 %v2582, %v2583
    %vm2585 = vcmask 131080
    %v2586 = vsel %vm2585, %v2531, 0.0
    %v2587 = vsel %vm2585, %v2534, 0.0
    %v2588 = vadd.f32 %v2586, %v2587
    %v2589 = vsel %vm2585, %v2537, 0.0
    %v2590 = vadd.f32 %v2588, %v2589
    %v2591 = vsel %vm2585, %v2540, 0.0
    %v2592 = vadd.f32 %v2590, %v2591
    %v2593 = vsel %vm2585, %v2543, 0.0
    %v2594 = vadd.f32 %v2592, %v2593
    %v2595 = vsel %vm2585, %v2546, 0.0
    %v2596 = vadd.f32 %v2594, %v2595
    %v2597 = vsel %vm2585, %v2549, 0.0
    %v2598 = vadd.f32 %v2596, %v2597
    %v2599 = vsel %vm2585, %v2552, 0.0
    %v2600 = vadd.f32 %v2598, %v2599
    %2604 = vrot.lane.b32.xlu0 %v2568, 127
    %v2605 = vpop.permute.xlu0 %2604
    %2606 = vrot.lane.b32.xlu0 %v2584, 127
    %v2607 = vpop.permute.xlu0 %2606
    %2608 = vrot.lane.b32.xlu0 %v2600, 127
    %v2609 = vpop.permute.xlu0 %2608
    %vm2613 = vcmask 130049
    %2614 = vst.msk [vmem:[#allocation2 - $0x1] sm:$0xfe] %vm2613, %v2605
    %vm2615 = vcmask 130048
    %2616 = vst.msk [vmem:[#allocation2 + $0x7] sm:$0xff] %vm2615, %v2607
    %vm2617 = vcmask 122880
    %2618 = vst.msk [vmem:[#allocation2 + $0xf] sm:$0x1] %vm2617, %v2609
    %v2619 = vsel %vm2615, %v2489, 0.0
    %v2620 = vsel %vm2615, %v2491, 0.0
    %v2621 = vadd.f32 %v2619, %v2620
    %v2622 = vsel %vm2615, %v2493, 0.0
    %v2623 = vadd.f32 %v2621, %v2622
    %v2624 = vsel %vm2615, %v2495, 0.0
    %v2625 = vadd.f32 %v2623, %v2624
    %v2626 = vsel %vm2615, %v2497, 0.0
    %v2627 = vadd.f32 %v2625, %v2626
    %v2628 = vsel %vm2615, %v2499, 0.0
    %v2629 = vadd.f32 %v2627, %v2628
    %v2630 = vsel %vm2615, %v2501, 0.0
    %v2631 = vadd.f32 %v2629, %v2630
    %v2632 = vsel %vm2615, %v2503, 0.0
    %v2633 = vadd.f32 %v2631, %v2632
    %v2634 = vsel %vm2615, %v2490, 0.0
    %v2635 = vsel %vm2615, %v2492, 0.0
    %v2636 = vadd.f32 %v2634, %v2635
    %v2637 = vsel %vm2615, %v2494, 0.0
    %v2638 = vadd.f32 %v2636, %v2637
    %v2639 = vsel %vm2615, %v2496, 0.0
    %v2640 = vadd.f32 %v2638, %v2639
    %v2641 = vsel %vm2615, %v2498, 0.0
    %v2642 = vadd.f32 %v2640, %v2641
    %v2643 = vsel %vm2615, %v2500, 0.0
    %v2644 = vadd.f32 %v2642, %v2643
    %v2645 = vsel %vm2615, %v2502, 0.0
    %v2646 = vadd.f32 %v2644, %v2645
    %v2647 = vsel %vm2615, %v2504, 0.0
    %v2648 = vadd.f32 %v2646, %v2647
    %2649 = vst.msk [vmem:[#allocation4] sm:$0xff] %vm2615, %v2633
    %2650 = vst.msk [vmem:[#allocation4 + $0x8] sm:$0xff] %vm2615, %v2648
    // Predicated region
    $region10: #{tpu_custom_call.1} parent=1 // pred_check
      _
    $region11: #{tpu_custom_call.1} parent=1 // pred_check_branch
      %2652 = sbr.rel (0) target = $region13
    $region12: #{tpu_custom_call.1} parent=1 // pred_region
      %s2654 = ssub.s32 256, 256
      %2655 = vsyncadd [#allocation3], %s2654
      %s2656 = sshll.u32 [#allocation2], 4
      %s2657 = int_to_ptr.vmem [resolvable:$true] %s2656
      %2662 = dma.vmem_to_hbm [thread:$0]  %s2657, 256, %s2, [#allocation3], 128, 128, 8
    $region13: #{tpu_custom_call.1} parent=1 // pred_fallthru
      _
    // Predicated region
    $region14: #{tpu_custom_call.1} parent=1 // pred_check
      _
    $region15: #{tpu_custom_call.1} parent=1 // pred_check_branch
      %2664 = sbr.rel (0) target = $region17
    $region16: #{tpu_custom_call.1} parent=1 // pred_region
      %s2666 = ssub.s32 256, 256
      %2667 = vsyncadd [#allocation5], %s2666
      %s2668 = sshll.u32 [#allocation4], 4
      %s2669 = int_to_ptr.vmem [resolvable:$true] %s2668
      %2674 = dma.vmem_to_hbm [thread:$0]  %s2669, 256, %s3, [#allocation5], 128, 128, 8
    $region17: #{tpu_custom_call.1} parent=1 // pred_fallthru
      _
    // Predicated region
    $region18: #{tpu_custom_call.1} parent=1 // pred_check
      _
    $region19: #{tpu_custom_call.1} parent=1 // pred_check_branch
      %2676 = sbr.rel (0) target = $region21
    $region20: #{tpu_custom_call.1} parent=1 // pred_region
      %2677 = dma.done [#allocation3], 256
    $region21: #{tpu_custom_call.1} parent=1 // pred_fallthru
      _
    // Predicated region
    $region22: #{tpu_custom_call.1} parent=1 // pred_check
      _
    $region23: #{tpu_custom_call.1} parent=1 // pred_check_branch
      %2679 = sbr.rel (0) target = $region25
    $region24: #{tpu_custom_call.1} parent=1 // pred_region
      %2680 = dma.done [#allocation5], 256
    $region25: #{tpu_custom_call.1} parent=1 // pred_fallthru
      _
    %2681 = vsyncpa [#allocation3], 1
    %2682 = vsyncpa [#allocation5], 1

</llo_original>
